<compile_context>
chip_gen: v7x
topology: tpu7x:2x2x1
jax: 0.10.0
libtpu: 0.0.40
codegen_flags: <defaults>
</compile_context>

<pallas_src>
import functools

import jax
import jax.numpy as jnp
from jax.experimental import pallas as pl
from jax.experimental.pallas import tpu as pltpu


# ---------------------------------------------------------------------------
# In-kernel helpers (operate on VMEM-resident values).
# ---------------------------------------------------------------------------
def _lstm_single_step(x, w_ih_t, b, H):
    """One LSTM step from zero initial state: h1 = o * tanh(i * g)."""
    gates = jnp.dot(x, w_ih_t, preferred_element_type=jnp.float32) + b
    i = jax.nn.sigmoid(gates[:, 0:H])
    g = jnp.tanh(gates[:, 2 * H:3 * H])
    o = jax.nn.sigmoid(gates[:, 3 * H:4 * H])
    return o * jnp.tanh(i * g)          # c1 = f*0 + i*g


def _linear_op(x, w_t, b, relu=False):
    y = jnp.dot(x, w_t, preferred_element_type=jnp.float32) + b
    return jnp.maximum(y, 0.0) if relu else y


# ---------------------------------------------------------------------------
# Fully fused forward kernel.
# ---------------------------------------------------------------------------
def _fused_kernel(x_ref,                      # (S*B, I) flattened time-major seq
                  wih1_ref, whh1_ref, b1_ref,  # LSTM1 (pre-transposed)
                  w2_ref, b2_ref,              # LSTM2 (W_ih only; h0 = 0)
                  w3_ref, b3_ref,              # LSTM3
                  wl1_ref, bl1_ref,            # Linear1
                  w4_ref, b4_ref,              # LSTM4
                  wl2_ref, bl2_ref,            # Linear2
                  wl3_ref, bl3_ref,            # Linear3 (+ ReLU)
                  o_ref,                       # (B, 1)
                  *, S, B, H1, H2, H3, H5):
    # ---- LSTM1 over the full sequence ------------------------------------
    # Hoist invariant loads out of the time loop.
    w_hh1 = whh1_ref[...]                     # (H1, 4*H1)
    # x-path for all timesteps in one matmul (+ bias), gate order [i, f, g, o].
    xg = (jnp.dot(x_ref[...], wih1_ref[...],
                  preferred_element_type=jnp.float32) + b1_ref[...])  # (S*B, 4H1)

    h = jnp.zeros((B, H1), jnp.float32)
    c = jnp.zeros((B, H1), jnp.float32)
    for t in range(S):                        # S is small & static: unrolled
        gates = xg[t * B:(t + 1) * B] + jnp.dot(
            h, w_hh1, preferred_element_type=jnp.float32)
        i = jax.nn.sigmoid(gates[:, 0:H1])
        f = jax.nn.sigmoid(gates[:, H1:2 * H1])
        g = jnp.tanh(gates[:, 2 * H1:3 * H1])
        o = jax.nn.sigmoid(gates[:, 3 * H1:4 * H1])
        c = f * c + i * g
        h = o * jnp.tanh(c)

    # ---- LSTM2 / LSTM3 (length-1 sequences, zero initial state) ----------
    h2 = _lstm_single_step(h, w2_ref[...], b2_ref[...], H2)
    h3 = _lstm_single_step(h2, w3_ref[...], b3_ref[...], H3)
    # ---- Linear -> LSTM4 -> Linear -> Linear -> ReLU ----------------------
    x4 = _linear_op(h3, wl1_ref[...], bl1_ref[...])
    h5 = _lstm_single_step(x4, w4_ref[...], b4_ref[...], H5)
    x6 = _linear_op(h5, wl2_ref[...], bl2_ref[...])
    y = _linear_op(x6, wl3_ref[...], bl3_ref[...], relu=True)   # (B, 1)
    # Final write is unconditional (not gated by pl.when).
    o_ref[...] = y


# ---------------------------------------------------------------------------
# Host-side wrapper: pad batch to sublane granularity, call the fused kernel.
# ---------------------------------------------------------------------------
def mylstm1_forward(features, params):
    """features: (S, B, I) float32  ->  (B, 1) float32 (== PyTorch `pred`)."""
    S, B, I = features.shape
    B_pad = ((B + 7) // 8) * 8                # pad to 8-sublane granularity
    x = jnp.zeros((S, B_pad, I), jnp.float32).at[:, :B, :].set(features)
    x = x.reshape(S * B_pad, I)               # flat time-major slab

    l1, l2, l3, l4 = (params["lstm1"], params["lstm2"],
                      params["lstm3"], params["lstm4"])
    H1 = l1["w_hh_t"].shape[0]
    H2 = l2["b"].shape[1] // 4
    H3 = l3["b"].shape[1] // 4
    H5 = l4["b"].shape[1] // 4

    kernel = functools.partial(_fused_kernel, S=S, B=B_pad,
                               H1=H1, H2=H2, H3=H3, H5=H5)
    out = pl.pallas_call(
        kernel,
        out_shape=jax.ShapeDtypeStruct((B_pad, 1), jnp.float32),
        compiler_params=pltpu.CompilerParams(
            vmem_limit_bytes=8 * 1024 * 1024),   # tiny working set; modest cap
    )(x,
      l1["w_ih_t"], l1["w_hh_t"], l1["b"],
      l2["w_ih_t"], l2["b"],
      l3["w_ih_t"], l3["b"],
      params["lin1"]["w_t"], params["lin1"]["b"],
      l4["w_ih_t"], l4["b"],
      params["lin2"]["w_t"], params["lin2"]["b"],
      params["lin3"]["w_t"], params["lin3"]["b"])
    return out[:B]


# ---------------------------------------------------------------------------
# Deterministic parameter initialization (PyTorch-style uniform ranges),
# stored pre-transposed for the kernel (no in-kernel .T).
# ---------------------------------------------------------------------------
def _uniform(key, shape, k):
    return jax.random.uniform(key, shape, jnp.float32, minval=-k, maxval=k)


def init_lstm(key, in_size, hidden):
    k = 1.0 / float(hidden) ** 0.5
    k1, k2, k3, k4 = jax.random.split(key, 4)
    w_ih = _uniform(k1, (4 * hidden, in_size), k)   # gate order [i, f, g, o]
    w_hh = _uniform(k2, (4 * hidden, hidden), k)
    b_ih = _uniform(k3, (4 * hidden,), k)
    b_hh = _uniform(k4, (4 * hidden,), k)
    return {"w_ih_t": jnp.asarray(w_ih.T),          # (in, 4H)
            "w_hh_t": jnp.asarray(w_hh.T),          # (H, 4H)
            "b": (b_ih + b_hh).reshape(1, 4 * hidden)}


def init_linear(key, in_size, out_size):
    k = 1.0 / float(in_size) ** 0.5
    k1, k2 = jax.random.split(key)
    w = _uniform(k1, (out_size, in_size), k)
    b = _uniform(k2, (out_size,), k)
    return {"w_t": jnp.asarray(w.T),                # (in, out)
            "b": b.reshape(1, out_size)}


if __name__ == "__main__":
    SEQ, BATCH = 8, 2
    INPUT_SIZE = 4
    H1, H2, H3, H4, H5, H6 = 32, 32, 32, 16, 32, 16

    root = jax.random.PRNGKey(0)
    keys = jax.random.split(root, 8)
    params = {
        "lstm1": init_lstm(keys[0], INPUT_SIZE, H1),
        "lstm2": init_lstm(keys[1], H1, H2),
        "lstm3": init_lstm(keys[2], H2, H3),
        "lin1": init_linear(keys[3], H3, H4),
        "lstm4": init_lstm(keys[4], H4, H5),
        "lin2": init_linear(keys[5], H5, H6),
        "lin3": init_linear(keys[6], H6, 1),
    }
    features = jax.random.normal(keys[7], (SEQ, BATCH, INPUT_SIZE), jnp.float32)

    pred = mylstm1_forward(features, params)
    jax.block_until_ready(pred)
    assert pred.shape == (BATCH, 1), pred.shape
    assert bool(jnp.all(jnp.isfinite(pred))) and bool(jnp.all(pred >= 0.0))
    print("KERNEL_OK")
</pallas_src>

<mosaic_0001>
module attributes {stable_mosaic.version = 11 : i64} {
  func.func @_fused_kernel(%arg0: memref<64x4xf32, #tpu.memory_space<vmem>>, %arg1: memref<4x128xf32, #tpu.memory_space<vmem>>, %arg2: memref<32x128xf32, #tpu.memory_space<vmem>>, %arg3: memref<1x128xf32, #tpu.memory_space<vmem>>, %arg4: memref<32x128xf32, #tpu.memory_space<vmem>>, %arg5: memref<1x128xf32, #tpu.memory_space<vmem>>, %arg6: memref<32x128xf32, #tpu.memory_space<vmem>>, %arg7: memref<1x128xf32, #tpu.memory_space<vmem>>, %arg8: memref<32x16xf32, #tpu.memory_space<vmem>>, %arg9: memref<1x16xf32, #tpu.memory_space<vmem>>, %arg10: memref<16x128xf32, #tpu.memory_space<vmem>>, %arg11: memref<1x128xf32, #tpu.memory_space<vmem>>, %arg12: memref<32x16xf32, #tpu.memory_space<vmem>>, %arg13: memref<1x16xf32, #tpu.memory_space<vmem>>, %arg14: memref<16x1xf32, #tpu.memory_space<vmem>>, %arg15: memref<1x1xf32, #tpu.memory_space<vmem>>, %arg16: memref<8x1xf32, #tpu.memory_space<vmem>>) attributes {dimension_semantics = [], scalar_prefetch = 0 : i64, scratch_operands = 0 : i64, tpu.core_type = #tpu.core_type<tc>} {
    %c0 = arith.constant 0 : index
    %c0_0 = arith.constant 0 : index
    %0 = vector.load %arg2[%c0, %c0_0] : memref<32x128xf32, #tpu.memory_space<vmem>>, vector<32x128xf32>
    %c0_1 = arith.constant 0 : index
    %c0_2 = arith.constant 0 : index
    %1 = vector.load %arg0[%c0_1, %c0_2] : memref<64x4xf32, #tpu.memory_space<vmem>>, vector<64x4xf32>
    %c0_3 = arith.constant 0 : index
    %c0_4 = arith.constant 0 : index
    %2 = vector.load %arg1[%c0_3, %c0_4] : memref<4x128xf32, #tpu.memory_space<vmem>>, vector<4x128xf32>
    %cst = arith.constant dense<0.000000e+00> : vector<64x128xf32>
    %3 = tpu.matmul %1, %2, %cst {dimension_numbers = #tpu.dot_dimension_numbers<[1], [0], [0], [1], [0, 0, 1, 1], [], []>} : vector<64x4xf32>, vector<4x128xf32>, vector<64x128xf32> -> vector<64x128xf32>
    %c0_5 = arith.constant 0 : index
    %c0_6 = arith.constant 0 : index
    %4 = vector.load %arg3[%c0_5, %c0_6] : memref<1x128xf32, #tpu.memory_space<vmem>>, vector<1x128xf32>
    %5 = vector.broadcast %4 : vector<1x128xf32> to vector<64x128xf32>
    %6 = arith.addf %3, %5 : vector<64x128xf32>
    %cst_7 = arith.constant 0.000000e+00 : f32
    %7 = vector.broadcast %cst_7 : f32 to vector<8x32xf32>
    %cst_8 = arith.constant 0.000000e+00 : f32
    %8 = vector.broadcast %cst_8 : f32 to vector<8x32xf32>
    %9 = vector.extract_strided_slice %6 {offsets = [0, 0], sizes = [8, 128], strides = [1, 1]} : vector<64x128xf32> to vector<8x128xf32>
    %cst_9 = arith.constant dense<0.000000e+00> : vector<8x128xf32>
    %10 = tpu.matmul %7, %0, %cst_9 {dimension_numbers = #tpu.dot_dimension_numbers<[1], [0], [0], [1], [0, 0, 1, 1], [], []>} : vector<8x32xf32>, vector<32x128xf32>, vector<8x128xf32> -> vector<8x128xf32>
    %11 = arith.addf %9, %10 : vector<8x128xf32>
    %12 = vector.extract_strided_slice %11 {offsets = [0, 0], sizes = [8, 32], strides = [1, 1]} : vector<8x128xf32> to vector<8x32xf32>
    %13 = arith.negf %12 : vector<8x32xf32>
    %14 = math.exp %13 : vector<8x32xf32>
    %cst_10 = arith.constant 1.000000e+00 : f32
    %15 = vector.broadcast %cst_10 : f32 to vector<8x32xf32>
    %16 = arith.addf %15, %14 : vector<8x32xf32>
    %17 = arith.divf %15, %16 : vector<8x32xf32>
    %18 = vector.extract_strided_slice %11 {offsets = [0, 32], sizes = [8, 32], strides = [1, 1]} : vector<8x128xf32> to vector<8x32xf32>
    %19 = arith.negf %18 : vector<8x32xf32>
    %20 = math.exp %19 : vector<8x32xf32>
    %cst_11 = arith.constant 1.000000e+00 : f32
    %21 = vector.broadcast %cst_11 : f32 to vector<8x32xf32>
    %22 = arith.addf %21, %20 : vector<8x32xf32>
    %23 = arith.divf %21, %22 : vector<8x32xf32>
    %24 = vector.extract_strided_slice %11 {offsets = [0, 64], sizes = [8, 32], strides = [1, 1]} : vector<8x128xf32> to vector<8x32xf32>
    %25 = math.tanh %24 : vector<8x32xf32>
    %26 = vector.extract_strided_slice %11 {offsets = [0, 96], sizes = [8, 32], strides = [1, 1]} : vector<8x128xf32> to vector<8x32xf32>
    %27 = arith.negf %26 : vector<8x32xf32>
    %28 = math.exp %27 : vector<8x32xf32>
    %cst_12 = arith.constant 1.000000e+00 : f32
    %29 = vector.broadcast %cst_12 : f32 to vector<8x32xf32>
    %30 = arith.addf %29, %28 : vector<8x32xf32>
    %31 = arith.divf %29, %30 : vector<8x32xf32>
    %32 = arith.mulf %23, %8 : vector<8x32xf32>
    %33 = arith.mulf %17, %25 : vector<8x32xf32>
    %34 = arith.addf %32, %33 : vector<8x32xf32>
    %35 = math.tanh %34 : vector<8x32xf32>
    %36 = arith.mulf %31, %35 : vector<8x32xf32>
    %37 = vector.extract_strided_slice %6 {offsets = [8, 0], sizes = [8, 128], strides = [1, 1]} : vector<64x128xf32> to vector<8x128xf32>
    %cst_13 = arith.constant dense<0.000000e+00> : vector<8x128xf32>
    %38 = tpu.matmul %36, %0, %cst_13 {dimension_numbers = #tpu.dot_dimension_numbers<[1], [0], [0], [1], [0, 0, 1, 1], [], []>} : vector<8x32xf32>, vector<32x128xf32>, vector<8x128xf32> -> vector<8x128xf32>
    %39 = arith.addf %37, %38 : vector<8x128xf32>
    %40 = vector.extract_strided_slice %39 {offsets = [0, 0], sizes = [8, 32], strides = [1, 1]} : vector<8x128xf32> to vector<8x32xf32>
    %41 = arith.negf %40 : vector<8x32xf32>
    %42 = math.exp %41 : vector<8x32xf32>
    %cst_14 = arith.constant 1.000000e+00 : f32
    %43 = vector.broadcast %cst_14 : f32 to vector<8x32xf32>
    %44 = arith.addf %43, %42 : vector<8x32xf32>
    %45 = arith.divf %43, %44 : vector<8x32xf32>
    %46 = vector.extract_strided_slice %39 {offsets = [0, 32], sizes = [8, 32], strides = [1, 1]} : vector<8x128xf32> to vector<8x32xf32>
    %47 = arith.negf %46 : vector<8x32xf32>
    %48 = math.exp %47 : vector<8x32xf32>
    %cst_15 = arith.constant 1.000000e+00 : f32
    %49 = vector.broadcast %cst_15 : f32 to vector<8x32xf32>
    %50 = arith.addf %49, %48 : vector<8x32xf32>
    %51 = arith.divf %49, %50 : vector<8x32xf32>
    %52 = vector.extract_strided_slice %39 {offsets = [0, 64], sizes = [8, 32], strides = [1, 1]} : vector<8x128xf32> to vector<8x32xf32>
    %53 = math.tanh %52 : vector<8x32xf32>
    %54 = vector.extract_strided_slice %39 {offsets = [0, 96], sizes = [8, 32], strides = [1, 1]} : vector<8x128xf32> to vector<8x32xf32>
    %55 = arith.negf %54 : vector<8x32xf32>
    %56 = math.exp %55 : vector<8x32xf32>
    %cst_16 = arith.constant 1.000000e+00 : f32
    %57 = vector.broadcast %cst_16 : f32 to vector<8x32xf32>
    %58 = arith.addf %57, %56 : vector<8x32xf32>
    %59 = arith.divf %57, %58 : vector<8x32xf32>
    %60 = arith.mulf %51, %34 : vector<8x32xf32>
    %61 = arith.mulf %45, %53 : vector<8x32xf32>
    %62 = arith.addf %60, %61 : vector<8x32xf32>
    %63 = math.tanh %62 : vector<8x32xf32>
    %64 = arith.mulf %59, %63 : vector<8x32xf32>
    %65 = vector.extract_strided_slice %6 {offsets = [16, 0], sizes = [8, 128], strides = [1, 1]} : vector<64x128xf32> to vector<8x128xf32>
    %cst_17 = arith.constant dense<0.000000e+00> : vector<8x128xf32>
    %66 = tpu.matmul %64, %0, %cst_17 {dimension_numbers = #tpu.dot_dimension_numbers<[1], [0], [0], [1], [0, 0, 1, 1], [], []>} : vector<8x32xf32>, vector<32x128xf32>, vector<8x128xf32> -> vector<8x128xf32>
    %67 = arith.addf %65, %66 : vector<8x128xf32>
    %68 = vector.extract_strided_slice %67 {offsets = [0, 0], sizes = [8, 32], strides = [1, 1]} : vector<8x128xf32> to vector<8x32xf32>
    %69 = arith.negf %68 : vector<8x32xf32>
    %70 = math.exp %69 : vector<8x32xf32>
    %cst_18 = arith.constant 1.000000e+00 : f32
    %71 = vector.broadcast %cst_18 : f32 to vector<8x32xf32>
    %72 = arith.addf %71, %70 : vector<8x32xf32>
    %73 = arith.divf %71, %72 : vector<8x32xf32>
    %74 = vector.extract_strided_slice %67 {offsets = [0, 32], sizes = [8, 32], strides = [1, 1]} : vector<8x128xf32> to vector<8x32xf32>
    %75 = arith.negf %74 : vector<8x32xf32>
    %76 = math.exp %75 : vector<8x32xf32>
    %cst_19 = arith.constant 1.000000e+00 : f32
    %77 = vector.broadcast %cst_19 : f32 to vector<8x32xf32>
    %78 = arith.addf %77, %76 : vector<8x32xf32>
    %79 = arith.divf %77, %78 : vector<8x32xf32>
    %80 = vector.extract_strided_slice %67 {offsets = [0, 64], sizes = [8, 32], strides = [1, 1]} : vector<8x128xf32> to vector<8x32xf32>
    %81 = math.tanh %80 : vector<8x32xf32>
    %82 = vector.extract_strided_slice %67 {offsets = [0, 96], sizes = [8, 32], strides = [1, 1]} : vector<8x128xf32> to vector<8x32xf32>
    %83 = arith.negf %82 : vector<8x32xf32>
    %84 = math.exp %83 : vector<8x32xf32>
    %cst_20 = arith.constant 1.000000e+00 : f32
    %85 = vector.broadcast %cst_20 : f32 to vector<8x32xf32>
    %86 = arith.addf %85, %84 : vector<8x32xf32>
    %87 = arith.divf %85, %86 : vector<8x32xf32>
    %88 = arith.mulf %79, %62 : vector<8x32xf32>
    %89 = arith.mulf %73, %81 : vector<8x32xf32>
    %90 = arith.addf %88, %89 : vector<8x32xf32>
    %91 = math.tanh %90 : vector<8x32xf32>
    %92 = arith.mulf %87, %91 : vector<8x32xf32>
    %93 = vector.extract_strided_slice %6 {offsets = [24, 0], sizes = [8, 128], strides = [1, 1]} : vector<64x128xf32> to vector<8x128xf32>
    %cst_21 = arith.constant dense<0.000000e+00> : vector<8x128xf32>
    %94 = tpu.matmul %92, %0, %cst_21 {dimension_numbers = #tpu.dot_dimension_numbers<[1], [0], [0], [1], [0, 0, 1, 1], [], []>} : vector<8x32xf32>, vector<32x128xf32>, vector<8x128xf32> -> vector<8x128xf32>
    %95 = arith.addf %93, %94 : vector<8x128xf32>
    %96 = vector.extract_strided_slice %95 {offsets = [0, 0], sizes = [8, 32], strides = [1, 1]} : vector<8x128xf32> to vector<8x32xf32>
    %97 = arith.negf %96 : vector<8x32xf32>
    %98 = math.exp %97 : vector<8x32xf32>
    %cst_22 = arith.constant 1.000000e+00 : f32
    %99 = vector.broadcast %cst_22 : f32 to vector<8x32xf32>
    %100 = arith.addf %99, %98 : vector<8x32xf32>
    %101 = arith.divf %99, %100 : vector<8x32xf32>
    %102 = vector.extract_strided_slice %95 {offsets = [0, 32], sizes = [8, 32], strides = [1, 1]} : vector<8x128xf32> to vector<8x32xf32>
    %103 = arith.negf %102 : vector<8x32xf32>
    %104 = math.exp %103 : vector<8x32xf32>
    %cst_23 = arith.constant 1.000000e+00 : f32
    %105 = vector.broadcast %cst_23 : f32 to vector<8x32xf32>
    %106 = arith.addf %105, %104 : vector<8x32xf32>
    %107 = arith.divf %105, %106 : vector<8x32xf32>
    %108 = vector.extract_strided_slice %95 {offsets = [0, 64], sizes = [8, 32], strides = [1, 1]} : vector<8x128xf32> to vector<8x32xf32>
    %109 = math.tanh %108 : vector<8x32xf32>
    %110 = vector.extract_strided_slice %95 {offsets = [0, 96], sizes = [8, 32], strides = [1, 1]} : vector<8x128xf32> to vector<8x32xf32>
    %111 = arith.negf %110 : vector<8x32xf32>
    %112 = math.exp %111 : vector<8x32xf32>
    %cst_24 = arith.constant 1.000000e+00 : f32
    %113 = vector.broadcast %cst_24 : f32 to vector<8x32xf32>
    %114 = arith.addf %113, %112 : vector<8x32xf32>
    %115 = arith.divf %113, %114 : vector<8x32xf32>
    %116 = arith.mulf %107, %90 : vector<8x32xf32>
    %117 = arith.mulf %101, %109 : vector<8x32xf32>
    %118 = arith.addf %116, %117 : vector<8x32xf32>
    %119 = math.tanh %118 : vector<8x32xf32>
    %120 = arith.mulf %115, %119 : vector<8x32xf32>
    %121 = vector.extract_strided_slice %6 {offsets = [32, 0], sizes = [8, 128], strides = [1, 1]} : vector<64x128xf32> to vector<8x128xf32>
    %cst_25 = arith.constant dense<0.000000e+00> : vector<8x128xf32>
    %122 = tpu.matmul %120, %0, %cst_25 {dimension_numbers = #tpu.dot_dimension_numbers<[1], [0], [0], [1], [0, 0, 1, 1], [], []>} : vector<8x32xf32>, vector<32x128xf32>, vector<8x128xf32> -> vector<8x128xf32>
    %123 = arith.addf %121, %122 : vector<8x128xf32>
    %124 = vector.extract_strided_slice %123 {offsets = [0, 0], sizes = [8, 32], strides = [1, 1]} : vector<8x128xf32> to vector<8x32xf32>
    %125 = arith.negf %124 : vector<8x32xf32>
    %126 = math.exp %125 : vector<8x32xf32>
    %cst_26 = arith.constant 1.000000e+00 : f32
    %127 = vector.broadcast %cst_26 : f32 to vector<8x32xf32>
    %128 = arith.addf %127, %126 : vector<8x32xf32>
    %129 = arith.divf %127, %128 : vector<8x32xf32>
    %130 = vector.extract_strided_slice %123 {offsets = [0, 32], sizes = [8, 32], strides = [1, 1]} : vector<8x128xf32> to vector<8x32xf32>
    %131 = arith.negf %130 : vector<8x32xf32>
    %132 = math.exp %131 : vector<8x32xf32>
    %cst_27 = arith.constant 1.000000e+00 : f32
    %133 = vector.broadcast %cst_27 : f32 to vector<8x32xf32>
    %134 = arith.addf %133, %132 : vector<8x32xf32>
    %135 = arith.divf %133, %134 : vector<8x32xf32>
    %136 = vector.extract_strided_slice %123 {offsets = [0, 64], sizes = [8, 32], strides = [1, 1]} : vector<8x128xf32> to vector<8x32xf32>
    %137 = math.tanh %136 : vector<8x32xf32>
    %138 = vector.extract_strided_slice %123 {offsets = [0, 96], sizes = [8, 32], strides = [1, 1]} : vector<8x128xf32> to vector<8x32xf32>
    %139 = arith.negf %138 : vector<8x32xf32>
    %140 = math.exp %139 : vector<8x32xf32>
    %cst_28 = arith.constant 1.000000e+00 : f32
    %141 = vector.broadcast %cst_28 : f32 to vector<8x32xf32>
    %142 = arith.addf %141, %140 : vector<8x32xf32>
    %143 = arith.divf %141, %142 : vector<8x32xf32>
    %144 = arith.mulf %135, %118 : vector<8x32xf32>
    %145 = arith.mulf %129, %137 : vector<8x32xf32>
    %146 = arith.addf %144, %145 : vector<8x32xf32>
    %147 = math.tanh %146 : vector<8x32xf32>
    %148 = arith.mulf %143, %147 : vector<8x32xf32>
    %149 = vector.extract_strided_slice %6 {offsets = [40, 0], sizes = [8, 128], strides = [1, 1]} : vector<64x128xf32> to vector<8x128xf32>
    %cst_29 = arith.constant dense<0.000000e+00> : vector<8x128xf32>
    %150 = tpu.matmul %148, %0, %cst_29 {dimension_numbers = #tpu.dot_dimension_numbers<[1], [0], [0], [1], [0, 0, 1, 1], [], []>} : vector<8x32xf32>, vector<32x128xf32>, vector<8x128xf32> -> vector<8x128xf32>
    %151 = arith.addf %149, %150 : vector<8x128xf32>
    %152 = vector.extract_strided_slice %151 {offsets = [0, 0], sizes = [8, 32], strides = [1, 1]} : vector<8x128xf32> to vector<8x32xf32>
    %153 = arith.negf %152 : vector<8x32xf32>
    %154 = math.exp %153 : vector<8x32xf32>
    %cst_30 = arith.constant 1.000000e+00 : f32
    %155 = vector.broadcast %cst_30 : f32 to vector<8x32xf32>
    %156 = arith.addf %155, %154 : vector<8x32xf32>
    %157 = arith.divf %155, %156 : vector<8x32xf32>
    %158 = vector.extract_strided_slice %151 {offsets = [0, 32], sizes = [8, 32], strides = [1, 1]} : vector<8x128xf32> to vector<8x32xf32>
    %159 = arith.negf %158 : vector<8x32xf32>
    %160 = math.exp %159 : vector<8x32xf32>
    %cst_31 = arith.constant 1.000000e+00 : f32
    %161 = vector.broadcast %cst_31 : f32 to vector<8x32xf32>
    %162 = arith.addf %161, %160 : vector<8x32xf32>
    %163 = arith.divf %161, %162 : vector<8x32xf32>
    %164 = vector.extract_strided_slice %151 {offsets = [0, 64], sizes = [8, 32], strides = [1, 1]} : vector<8x128xf32> to vector<8x32xf32>
    %165 = math.tanh %164 : vector<8x32xf32>
    %166 = vector.extract_strided_slice %151 {offsets = [0, 96], sizes = [8, 32], strides = [1, 1]} : vector<8x128xf32> to vector<8x32xf32>
    %167 = arith.negf %166 : vector<8x32xf32>
    %168 = math.exp %167 : vector<8x32xf32>
    %cst_32 = arith.constant 1.000000e+00 : f32
    %169 = vector.broadcast %cst_32 : f32 to vector<8x32xf32>
    %170 = arith.addf %169, %168 : vector<8x32xf32>
    %171 = arith.divf %169, %170 : vector<8x32xf32>
    %172 = arith.mulf %163, %146 : vector<8x32xf32>
    %173 = arith.mulf %157, %165 : vector<8x32xf32>
    %174 = arith.addf %172, %173 : vector<8x32xf32>
    %175 = math.tanh %174 : vector<8x32xf32>
    %176 = arith.mulf %171, %175 : vector<8x32xf32>
    %177 = vector.extract_strided_slice %6 {offsets = [48, 0], sizes = [8, 128], strides = [1, 1]} : vector<64x128xf32> to vector<8x128xf32>
    %cst_33 = arith.constant dense<0.000000e+00> : vector<8x128xf32>
    %178 = tpu.matmul %176, %0, %cst_33 {dimension_numbers = #tpu.dot_dimension_numbers<[1], [0], [0], [1], [0, 0, 1, 1], [], []>} : vector<8x32xf32>, vector<32x128xf32>, vector<8x128xf32> -> vector<8x128xf32>
    %179 = arith.addf %177, %178 : vector<8x128xf32>
    %180 = vector.extract_strided_slice %179 {offsets = [0, 0], sizes = [8, 32], strides = [1, 1]} : vector<8x128xf32> to vector<8x32xf32>
    %181 = arith.negf %180 : vector<8x32xf32>
    %182 = math.exp %181 : vector<8x32xf32>
    %cst_34 = arith.constant 1.000000e+00 : f32
    %183 = vector.broadcast %cst_34 : f32 to vector<8x32xf32>
    %184 = arith.addf %183, %182 : vector<8x32xf32>
    %185 = arith.divf %183, %184 : vector<8x32xf32>
    %186 = vector.extract_strided_slice %179 {offsets = [0, 32], sizes = [8, 32], strides = [1, 1]} : vector<8x128xf32> to vector<8x32xf32>
    %187 = arith.negf %186 : vector<8x32xf32>
    %188 = math.exp %187 : vector<8x32xf32>
    %cst_35 = arith.constant 1.000000e+00 : f32
    %189 = vector.broadcast %cst_35 : f32 to vector<8x32xf32>
    %190 = arith.addf %189, %188 : vector<8x32xf32>
    %191 = arith.divf %189, %190 : vector<8x32xf32>
    %192 = vector.extract_strided_slice %179 {offsets = [0, 64], sizes = [8, 32], strides = [1, 1]} : vector<8x128xf32> to vector<8x32xf32>
    %193 = math.tanh %192 : vector<8x32xf32>
    %194 = vector.extract_strided_slice %179 {offsets = [0, 96], sizes = [8, 32], strides = [1, 1]} : vector<8x128xf32> to vector<8x32xf32>
    %195 = arith.negf %194 : vector<8x32xf32>
    %196 = math.exp %195 : vector<8x32xf32>
    %cst_36 = arith.constant 1.000000e+00 : f32
    %197 = vector.broadcast %cst_36 : f32 to vector<8x32xf32>
    %198 = arith.addf %197, %196 : vector<8x32xf32>
    %199 = arith.divf %197, %198 : vector<8x32xf32>
    %200 = arith.mulf %191, %174 : vector<8x32xf32>
    %201 = arith.mulf %185, %193 : vector<8x32xf32>
    %202 = arith.addf %200, %201 : vector<8x32xf32>
    %203 = math.tanh %202 : vector<8x32xf32>
    %204 = arith.mulf %199, %203 : vector<8x32xf32>
    %205 = vector.extract_strided_slice %6 {offsets = [56, 0], sizes = [8, 128], strides = [1, 1]} : vector<64x128xf32> to vector<8x128xf32>
    %cst_37 = arith.constant dense<0.000000e+00> : vector<8x128xf32>
    %206 = tpu.matmul %204, %0, %cst_37 {dimension_numbers = #tpu.dot_dimension_numbers<[1], [0], [0], [1], [0, 0, 1, 1], [], []>} : vector<8x32xf32>, vector<32x128xf32>, vector<8x128xf32> -> vector<8x128xf32>
    %207 = arith.addf %205, %206 : vector<8x128xf32>
    %208 = vector.extract_strided_slice %207 {offsets = [0, 0], sizes = [8, 32], strides = [1, 1]} : vector<8x128xf32> to vector<8x32xf32>
    %209 = arith.negf %208 : vector<8x32xf32>
    %210 = math.exp %209 : vector<8x32xf32>
    %cst_38 = arith.constant 1.000000e+00 : f32
    %211 = vector.broadcast %cst_38 : f32 to vector<8x32xf32>
    %212 = arith.addf %211, %210 : vector<8x32xf32>
    %213 = arith.divf %211, %212 : vector<8x32xf32>
    %214 = vector.extract_strided_slice %207 {offsets = [0, 32], sizes = [8, 32], strides = [1, 1]} : vector<8x128xf32> to vector<8x32xf32>
    %215 = arith.negf %214 : vector<8x32xf32>
    %216 = math.exp %215 : vector<8x32xf32>
    %cst_39 = arith.constant 1.000000e+00 : f32
    %217 = vector.broadcast %cst_39 : f32 to vector<8x32xf32>
    %218 = arith.addf %217, %216 : vector<8x32xf32>
    %219 = arith.divf %217, %218 : vector<8x32xf32>
    %220 = vector.extract_strided_slice %207 {offsets = [0, 64], sizes = [8, 32], strides = [1, 1]} : vector<8x128xf32> to vector<8x32xf32>
    %221 = math.tanh %220 : vector<8x32xf32>
    %222 = vector.extract_strided_slice %207 {offsets = [0, 96], sizes = [8, 32], strides = [1, 1]} : vector<8x128xf32> to vector<8x32xf32>
    %223 = arith.negf %222 : vector<8x32xf32>
    %224 = math.exp %223 : vector<8x32xf32>
    %cst_40 = arith.constant 1.000000e+00 : f32
    %225 = vector.broadcast %cst_40 : f32 to vector<8x32xf32>
    %226 = arith.addf %225, %224 : vector<8x32xf32>
    %227 = arith.divf %225, %226 : vector<8x32xf32>
    %228 = arith.mulf %219, %202 : vector<8x32xf32>
    %229 = arith.mulf %213, %221 : vector<8x32xf32>
    %230 = arith.addf %228, %229 : vector<8x32xf32>
    %231 = math.tanh %230 : vector<8x32xf32>
    %232 = arith.mulf %227, %231 : vector<8x32xf32>
    %c0_41 = arith.constant 0 : index
    %c0_42 = arith.constant 0 : index
    %233 = vector.load %arg4[%c0_41, %c0_42] : memref<32x128xf32, #tpu.memory_space<vmem>>, vector<32x128xf32>
    %c0_43 = arith.constant 0 : index
    %c0_44 = arith.constant 0 : index
    %234 = vector.load %arg5[%c0_43, %c0_44] : memref<1x128xf32, #tpu.memory_space<vmem>>, vector<1x128xf32>
    %cst_45 = arith.constant dense<0.000000e+00> : vector<8x128xf32>
    %235 = tpu.matmul %232, %233, %cst_45 {dimension_numbers = #tpu.dot_dimension_numbers<[1], [0], [0], [1], [0, 0, 1, 1], [], []>} : vector<8x32xf32>, vector<32x128xf32>, vector<8x128xf32> -> vector<8x128xf32>
    %236 = vector.broadcast %234 : vector<1x128xf32> to vector<8x128xf32>
    %237 = arith.addf %235, %236 : vector<8x128xf32>
    %238 = vector.extract_strided_slice %237 {offsets = [0, 0], sizes = [8, 32], strides = [1, 1]} : vector<8x128xf32> to vector<8x32xf32>
    %239 = arith.negf %238 : vector<8x32xf32>
    %240 = math.exp %239 : vector<8x32xf32>
    %cst_46 = arith.constant 1.000000e+00 : f32
    %241 = vector.broadcast %cst_46 : f32 to vector<8x32xf32>
    %242 = arith.addf %241, %240 : vector<8x32xf32>
    %243 = arith.divf %241, %242 : vector<8x32xf32>
    %244 = vector.extract_strided_slice %237 {offsets = [0, 64], sizes = [8, 32], strides = [1, 1]} : vector<8x128xf32> to vector<8x32xf32>
    %245 = math.tanh %244 : vector<8x32xf32>
    %246 = vector.extract_strided_slice %237 {offsets = [0, 96], sizes = [8, 32], strides = [1, 1]} : vector<8x128xf32> to vector<8x32xf32>
    %247 = arith.negf %246 : vector<8x32xf32>
    %248 = math.exp %247 : vector<8x32xf32>
    %cst_47 = arith.constant 1.000000e+00 : f32
    %249 = vector.broadcast %cst_47 : f32 to vector<8x32xf32>
    %250 = arith.addf %249, %248 : vector<8x32xf32>
    %251 = arith.divf %249, %250 : vector<8x32xf32>
    %252 = arith.mulf %243, %245 : vector<8x32xf32>
    %253 = math.tanh %252 : vector<8x32xf32>
    %254 = arith.mulf %251, %253 : vector<8x32xf32>
    %c0_48 = arith.constant 0 : index
    %c0_49 = arith.constant 0 : index
    %255 = vector.load %arg6[%c0_48, %c0_49] : memref<32x128xf32, #tpu.memory_space<vmem>>, vector<32x128xf32>
    %c0_50 = arith.constant 0 : index
    %c0_51 = arith.constant 0 : index
    %256 = vector.load %arg7[%c0_50, %c0_51] : memref<1x128xf32, #tpu.memory_space<vmem>>, vector<1x128xf32>
    %cst_52 = arith.constant dense<0.000000e+00> : vector<8x128xf32>
    %257 = tpu.matmul %254, %255, %cst_52 {dimension_numbers = #tpu.dot_dimension_numbers<[1], [0], [0], [1], [0, 0, 1, 1], [], []>} : vector<8x32xf32>, vector<32x128xf32>, vector<8x128xf32> -> vector<8x128xf32>
    %258 = vector.broadcast %256 : vector<1x128xf32> to vector<8x128xf32>
    %259 = arith.addf %257, %258 : vector<8x128xf32>
    %260 = vector.extract_strided_slice %259 {offsets = [0, 0], sizes = [8, 32], strides = [1, 1]} : vector<8x128xf32> to vector<8x32xf32>
    %261 = arith.negf %260 : vector<8x32xf32>
    %262 = math.exp %261 : vector<8x32xf32>
    %cst_53 = arith.constant 1.000000e+00 : f32
    %263 = vector.broadcast %cst_53 : f32 to vector<8x32xf32>
    %264 = arith.addf %263, %262 : vector<8x32xf32>
    %265 = arith.divf %263, %264 : vector<8x32xf32>
    %266 = vector.extract_strided_slice %259 {offsets = [0, 64], sizes = [8, 32], strides = [1, 1]} : vector<8x128xf32> to vector<8x32xf32>
    %267 = math.tanh %266 : vector<8x32xf32>
    %268 = vector.extract_strided_slice %259 {offsets = [0, 96], sizes = [8, 32], strides = [1, 1]} : vector<8x128xf32> to vector<8x32xf32>
    %269 = arith.negf %268 : vector<8x32xf32>
    %270 = math.exp %269 : vector<8x32xf32>
    %cst_54 = arith.constant 1.000000e+00 : f32
    %271 = vector.broadcast %cst_54 : f32 to vector<8x32xf32>
    %272 = arith.addf %271, %270 : vector<8x32xf32>
    %273 = arith.divf %271, %272 : vector<8x32xf32>
    %274 = arith.mulf %265, %267 : vector<8x32xf32>
    %275 = math.tanh %274 : vector<8x32xf32>
    %276 = arith.mulf %273, %275 : vector<8x32xf32>
    %c0_55 = arith.constant 0 : index
    %c0_56 = arith.constant 0 : index
    %277 = vector.load %arg8[%c0_55, %c0_56] : memref<32x16xf32, #tpu.memory_space<vmem>>, vector<32x16xf32>
    %c0_57 = arith.constant 0 : index
    %c0_58 = arith.constant 0 : index
    %278 = vector.load %arg9[%c0_57, %c0_58] : memref<1x16xf32, #tpu.memory_space<vmem>>, vector<1x16xf32>
    %cst_59 = arith.constant dense<0.000000e+00> : vector<8x16xf32>
    %279 = tpu.matmul %276, %277, %cst_59 {dimension_numbers = #tpu.dot_dimension_numbers<[1], [0], [0], [1], [0, 0, 1, 1], [], []>} : vector<8x32xf32>, vector<32x16xf32>, vector<8x16xf32> -> vector<8x16xf32>
    %280 = vector.broadcast %278 : vector<1x16xf32> to vector<8x16xf32>
    %281 = arith.addf %279, %280 : vector<8x16xf32>
    %c0_60 = arith.constant 0 : index
    %c0_61 = arith.constant 0 : index
    %282 = vector.load %arg10[%c0_60, %c0_61] : memref<16x128xf32, #tpu.memory_space<vmem>>, vector<16x128xf32>
    %c0_62 = arith.constant 0 : index
    %c0_63 = arith.constant 0 : index
    %283 = vector.load %arg11[%c0_62, %c0_63] : memref<1x128xf32, #tpu.memory_space<vmem>>, vector<1x128xf32>
    %cst_64 = arith.constant dense<0.000000e+00> : vector<8x128xf32>
    %284 = tpu.matmul %281, %282, %cst_64 {dimension_numbers = #tpu.dot_dimension_numbers<[1], [0], [0], [1], [0, 0, 1, 1], [], []>} : vector<8x16xf32>, vector<16x128xf32>, vector<8x128xf32> -> vector<8x128xf32>
    %285 = vector.broadcast %283 : vector<1x128xf32> to vector<8x128xf32>
    %286 = arith.addf %284, %285 : vector<8x128xf32>
    %287 = vector.extract_strided_slice %286 {offsets = [0, 0], sizes = [8, 32], strides = [1, 1]} : vector<8x128xf32> to vector<8x32xf32>
    %288 = arith.negf %287 : vector<8x32xf32>
    %289 = math.exp %288 : vector<8x32xf32>
    %cst_65 = arith.constant 1.000000e+00 : f32
    %290 = vector.broadcast %cst_65 : f32 to vector<8x32xf32>
    %291 = arith.addf %290, %289 : vector<8x32xf32>
    %292 = arith.divf %290, %291 : vector<8x32xf32>
    %293 = vector.extract_strided_slice %286 {offsets = [0, 64], sizes = [8, 32], strides = [1, 1]} : vector<8x128xf32> to vector<8x32xf32>
    %294 = math.tanh %293 : vector<8x32xf32>
    %295 = vector.extract_strided_slice %286 {offsets = [0, 96], sizes = [8, 32], strides = [1, 1]} : vector<8x128xf32> to vector<8x32xf32>
    %296 = arith.negf %295 : vector<8x32xf32>
    %297 = math.exp %296 : vector<8x32xf32>
    %cst_66 = arith.constant 1.000000e+00 : f32
    %298 = vector.broadcast %cst_66 : f32 to vector<8x32xf32>
    %299 = arith.addf %298, %297 : vector<8x32xf32>
    %300 = arith.divf %298, %299 : vector<8x32xf32>
    %301 = arith.mulf %292, %294 : vector<8x32xf32>
    %302 = math.tanh %301 : vector<8x32xf32>
    %303 = arith.mulf %300, %302 : vector<8x32xf32>
    %c0_67 = arith.constant 0 : index
    %c0_68 = arith.constant 0 : index
    %304 = vector.load %arg12[%c0_67, %c0_68] : memref<32x16xf32, #tpu.memory_space<vmem>>, vector<32x16xf32>
    %c0_69 = arith.constant 0 : index
    %c0_70 = arith.constant 0 : index
    %305 = vector.load %arg13[%c0_69, %c0_70] : memref<1x16xf32, #tpu.memory_space<vmem>>, vector<1x16xf32>
    %cst_71 = arith.constant dense<0.000000e+00> : vector<8x16xf32>
    %306 = tpu.matmul %303, %304, %cst_71 {dimension_numbers = #tpu.dot_dimension_numbers<[1], [0], [0], [1], [0, 0, 1, 1], [], []>} : vector<8x32xf32>, vector<32x16xf32>, vector<8x16xf32> -> vector<8x16xf32>
    %307 = vector.broadcast %305 : vector<1x16xf32> to vector<8x16xf32>
    %308 = arith.addf %306, %307 : vector<8x16xf32>
    %c0_72 = arith.constant 0 : index
    %c0_73 = arith.constant 0 : index
    %309 = vector.load %arg14[%c0_72, %c0_73] : memref<16x1xf32, #tpu.memory_space<vmem>>, vector<16x1xf32>
    %c0_74 = arith.constant 0 : index
    %c0_75 = arith.constant 0 : index
    %310 = vector.load %arg15[%c0_74, %c0_75] : memref<1x1xf32, #tpu.memory_space<vmem>>, vector<1x1xf32>
    %cst_76 = arith.constant dense<0.000000e+00> : vector<8x1xf32>
    %311 = tpu.matmul %308, %309, %cst_76 {dimension_numbers = #tpu.dot_dimension_numbers<[1], [0], [0], [1], [0, 0, 1, 1], [], []>} : vector<8x16xf32>, vector<16x1xf32>, vector<8x1xf32> -> vector<8x1xf32>
    %312 = vector.broadcast %310 : vector<1x1xf32> to vector<8x1xf32>
    %313 = arith.addf %311, %312 : vector<8x1xf32>
    %cst_77 = arith.constant 0.000000e+00 : f32
    %314 = vector.broadcast %cst_77 : f32 to vector<8x1xf32>
    %315 = arith.maximumf %313, %314 : vector<8x1xf32>
    %c0_78 = arith.constant 0 : index
    %c0_79 = arith.constant 0 : index
    %316 = vector.load %arg16[%c0_78, %c0_79] : memref<8x1xf32, #tpu.memory_space<vmem>>, vector<8x1xf32>
    tpu.vector_store %arg16[%c0_78, %c0_79], %315 {strides = array<i32>} : memref<8x1xf32, #tpu.memory_space<vmem>>, vector<8x1xf32>,
    return
  }
}

</mosaic_0001>

<llo_original>
// kernel: tpu_custom_call.1
$region0: #{tpu_custom_call.1}
  #allocation0 [shape = 'u32[]', space=smem, size = 0x4, offset = 0x4, fixed_abs, tag = 'smem constant byte address 0x4 - core index']
  #allocation1 [shape = 'u32[144,128]{1,0:T(1,128)}', space=vmem, size = 0x12000, scoped, tag = 'internal scratch']
  #allocation2 [shape = 'f32[1,1]{1,0:T(1,128)S(1)}', space=vmem, size = 0x200, scoped, tag = 'scoped memory for tpu_custom_call.1']
  %s0 = inlined_call_operand.vmem [shape: f32[64,4], index: 0, kind: input, shape index: {}]
  %s1 = inlined_call_operand.vmem [shape: f32[4,128], index: 1, kind: input, shape index: {}]
  %s2 = inlined_call_operand.vmem [shape: f32[32,128], index: 2, kind: input, shape index: {}]
  %s3 = inlined_call_operand.vmem [shape: f32[1,128], index: 3, kind: input, shape index: {}]
  %s4 = inlined_call_operand.vmem [shape: f32[32,128], index: 4, kind: input, shape index: {}]
  %s5 = inlined_call_operand.vmem [shape: f32[1,128], index: 5, kind: input, shape index: {}]
  %s6 = inlined_call_operand.vmem [shape: f32[32,128], index: 6, kind: input, shape index: {}]
  %s7 = inlined_call_operand.vmem [shape: f32[1,128], index: 7, kind: input, shape index: {}]
  %s8 = inlined_call_operand.vmem [shape: f32[32,16], index: 8, kind: input, shape index: {}]
  %s9 = inlined_call_operand.vmem [shape: f32[1,16], index: 9, kind: input, shape index: {}]
  %s10 = inlined_call_operand.vmem [shape: f32[16,128], index: 10, kind: input, shape index: {}]
  %s11 = inlined_call_operand.vmem [shape: f32[1,128], index: 11, kind: input, shape index: {}]
  %s12 = inlined_call_operand.vmem [shape: f32[32,16], index: 12, kind: input, shape index: {}]
  %s13 = inlined_call_operand.vmem [shape: f32[1,16], index: 13, kind: input, shape index: {}]
  %s14 = inlined_call_operand.vmem [shape: f32[16,1], index: 14, kind: input, shape index: {}]
  %s15 = inlined_call_operand.<no memory space> [shape: f32[1,1], index: 15, kind: input, shape index: {}]
  %s16 = inlined_call_operand.vmem [shape: f32[8,1], index: 16, kind: output, shape index: {}]
  %s17 = sld [smem:[#allocation0]]
  $region74: #{tpu_custom_call.1} parent=0
    _
  %s19 = ssub.s32 1, %s17
  %s20 = scalar_select 0, %s19, %s17
  %v21 = vstv %s15
  %22 = vst [vmem:[#allocation2] sm:$0x1] %v21
  // Predicated region
  $region2: #{tpu_custom_call.1} parent=0 // pred_check
    _
  $region3: #{tpu_custom_call.1} parent=0 // pred_check_branch
    %24 = sbr.rel (0) target = $region5
  $region4: #{tpu_custom_call.1} parent=0 // pred_region
    _
  $region5: #{tpu_custom_call.1} parent=0 // pred_fallthru
    _
  // Predicated region
  $region6: #{tpu_custom_call.1} parent=0 // pred_check
    _
  $region7: #{tpu_custom_call.1} parent=0 // pred_check_branch
    %26 = sbr.rel (0) target = $region9
  $region8: #{tpu_custom_call.1} parent=0 // pred_region
    _
  $region9: #{tpu_custom_call.1} parent=0 // pred_fallthru
    _
  // Predicated region
  $region10: #{tpu_custom_call.1} parent=0 // pred_check
    _
  $region11: #{tpu_custom_call.1} parent=0 // pred_check_branch
    %28 = sbr.rel (0) target = $region13
  $region12: #{tpu_custom_call.1} parent=0 // pred_region
    _
  $region13: #{tpu_custom_call.1} parent=0 // pred_fallthru
    _
  // Predicated region
  $region14: #{tpu_custom_call.1} parent=0 // pred_check
    _
  $region15: #{tpu_custom_call.1} parent=0 // pred_check_branch
    %30 = sbr.rel (0) target = $region17
  $region16: #{tpu_custom_call.1} parent=0 // pred_region
    _
  $region17: #{tpu_custom_call.1} parent=0 // pred_fallthru
    _
  // Predicated region
  $region18: #{tpu_custom_call.1} parent=0 // pred_check
    _
  $region19: #{tpu_custom_call.1} parent=0 // pred_check_branch
    %32 = sbr.rel (0) target = $region21
  $region20: #{tpu_custom_call.1} parent=0 // pred_region
    _
  $region21: #{tpu_custom_call.1} parent=0 // pred_fallthru
    _
  // Predicated region
  $region22: #{tpu_custom_call.1} parent=0 // pred_check
    _
  $region23: #{tpu_custom_call.1} parent=0 // pred_check_branch
    %34 = sbr.rel (0) target = $region25
  $region24: #{tpu_custom_call.1} parent=0 // pred_region
    _
  $region25: #{tpu_custom_call.1} parent=0 // pred_fallthru
    _
  // Predicated region
  $region26: #{tpu_custom_call.1} parent=0 // pred_check
    _
  $region27: #{tpu_custom_call.1} parent=0 // pred_check_branch
    %36 = sbr.rel (0) target = $region29
  $region28: #{tpu_custom_call.1} parent=0 // pred_region
    _
  $region29: #{tpu_custom_call.1} parent=0 // pred_fallthru
    _
  // Predicated region
  $region30: #{tpu_custom_call.1} parent=0 // pred_check
    _
  $region31: #{tpu_custom_call.1} parent=0 // pred_check_branch
    %38 = sbr.rel (0) target = $region33
  $region32: #{tpu_custom_call.1} parent=0 // pred_region
    _
  $region33: #{tpu_custom_call.1} parent=0 // pred_fallthru
    _
  // Predicated region
  $region34: #{tpu_custom_call.1} parent=0 // pred_check
    _
  $region35: #{tpu_custom_call.1} parent=0 // pred_check_branch
    %40 = sbr.rel (0) target = $region37
  $region36: #{tpu_custom_call.1} parent=0 // pred_region
    _
  $region37: #{tpu_custom_call.1} parent=0 // pred_fallthru
    _
  // Predicated region
  $region38: #{tpu_custom_call.1} parent=0 // pred_check
    _
  $region39: #{tpu_custom_call.1} parent=0 // pred_check_branch
    %42 = sbr.rel (0) target = $region41
  $region40: #{tpu_custom_call.1} parent=0 // pred_region
    _
  $region41: #{tpu_custom_call.1} parent=0 // pred_fallthru
    _
  // Predicated region
  $region42: #{tpu_custom_call.1} parent=0 // pred_check
    _
  $region43: #{tpu_custom_call.1} parent=0 // pred_check_branch
    %44 = sbr.rel (0) target = $region45
  $region44: #{tpu_custom_call.1} parent=0 // pred_region
    _
  $region45: #{tpu_custom_call.1} parent=0 // pred_fallthru
    _
  // Predicated region
  $region46: #{tpu_custom_call.1} parent=0 // pred_check
    _
  $region47: #{tpu_custom_call.1} parent=0 // pred_check_branch
    %46 = sbr.rel (0) target = $region49
  $region48: #{tpu_custom_call.1} parent=0 // pred_region
    _
  $region49: #{tpu_custom_call.1} parent=0 // pred_fallthru
    _
  // Predicated region
  $region50: #{tpu_custom_call.1} parent=0 // pred_check
    _
  $region51: #{tpu_custom_call.1} parent=0 // pred_check_branch
    %48 = sbr.rel (0) target = $region53
  $region52: #{tpu_custom_call.1} parent=0 // pred_region
    _
  $region53: #{tpu_custom_call.1} parent=0 // pred_fallthru
    _
  // Predicated region
  $region54: #{tpu_custom_call.1} parent=0 // pred_check
    _
  $region55: #{tpu_custom_call.1} parent=0 // pred_check_branch
    %50 = sbr.rel (0) target = $region57
  $region56: #{tpu_custom_call.1} parent=0 // pred_region
    _
  $region57: #{tpu_custom_call.1} parent=0 // pred_fallthru
    _
  // Predicated region
  $region58: #{tpu_custom_call.1} parent=0 // pred_check
    _
  $region59: #{tpu_custom_call.1} parent=0 // pred_check_branch
    %52 = sbr.rel (0) target = $region61
  $region60: #{tpu_custom_call.1} parent=0 // pred_region
    _
  $region61: #{tpu_custom_call.1} parent=0 // pred_fallthru
    _
  // Predicated region
  $region62: #{tpu_custom_call.1} parent=0 // pred_check
    _
  $region63: #{tpu_custom_call.1} parent=0 // pred_check_branch
    %54 = sbr.rel (0) target = $region65
  $region64: #{tpu_custom_call.1} parent=0 // pred_region
    _
  $region65: #{tpu_custom_call.1} parent=0 // pred_fallthru
    _
  %v55 = vld [vmem:[%s2] sm:$0xff]
  %v56 = vld [vmem:[%s2 + $0x8] sm:$0xff]
  %v57 = vld [vmem:[%s2 + $0x10] sm:$0xff]
  %v58 = vld [vmem:[%s2 + $0x18] sm:$0xff]
  %v59 = vld [vmem:[%s0] sm:$0xff]
  %v60 = vld [vmem:[%s0 + $0x8] sm:$0xff]
  %v61 = vld [vmem:[%s0 + $0x10] sm:$0xff]
  %v62 = vld [vmem:[%s0 + $0x18] sm:$0xff]
  %v63 = vld [vmem:[%s0 + $0x20] sm:$0xff]
  %v64 = vld [vmem:[%s0 + $0x28] sm:$0xff]
  %v65 = vld [vmem:[%s0 + $0x30] sm:$0xff]
  %v66 = vld [vmem:[%s0 + $0x38] sm:$0xff]
  %v67 = vld [vmem:[%s1] sm:$0xf]
  %v68 = vld [vmem:[%s3] sm:$0x1]
  %v70 = vlaneseq
  %v71 = vshrl.u32 %v70, 7
  %v72 = vsub.s32 0, %v71
  %v73 = vrot.slane %v68, %v72
  %vm75 = vcmask 31744
  %v77 = vsel %vm75, %v59, 0
  %v80 = vsel %vm75, %v60, 0
  %v83 = vsel %vm75, %v61, 0
  %v86 = vsel %vm75, %v62, 0
  %v89 = vsel %vm75, %v63, 0
  %v92 = vsel %vm75, %v64, 0
  %v95 = vsel %vm75, %v65, 0
  %v98 = vsel %vm75, %v66, 0
  %vm100 = vcmask 1043456
  %v102 = vsel %vm100, %v67, 0
  %104 = vmatprep.subr.mxu0 0.0
  %105 = vmatpush1.msra.mxu0 %v102
  %106 = vmatprep.subr.mxu0 0.0
  %107 = vmatpush1.msra.mxu0 0.0
  %108 = vmatprep.subr.mxu0 0.0
  %109 = vmatpush1.msra.mxu0 0.0
  %110 = vmatprep.subr.mxu0 0.0
  %111 = vmatpush1.msra.mxu0 0.0
  %112 = vmatprep.subr.mxu0 0.0
  %113 = vmatpush1.msra.mxu0 0.0
  %114 = vmatprep.subr.mxu0 0.0
  %115 = vmatpush1.msra.mxu0 0.0
  %116 = vmatprep.subr.mxu0 0.0
  %117 = vmatpush1.msra.mxu0 0.0
  %118 = vmatprep.subr.mxu0 0.0
  %119 = vmatpush1.msra.mxu0 0.0
  %120 = vmatprep.subr.mxu0 0.0
  %121 = vmatpush1.msra.mxu0 0.0
  %122 = vmatprep.subr.mxu0 0.0
  %123 = vmatpush1.msra.mxu0 0.0
  %124 = vmatprep.subr.mxu0 0.0
  %125 = vmatpush1.msra.mxu0 0.0
  %126 = vmatprep.subr.mxu0 0.0
  %127 = vmatpush1.msra.mxu0 0.0
  %128 = vmatprep.subr.mxu0 0.0
  %129 = vmatpush1.msra.mxu0 0.0
  %130 = vmatprep.subr.mxu0 0.0
  %131 = vmatpush1.msra.mxu0 0.0
  %132 = vmatprep.subr.mxu0 0.0
  %133 = vmatpush1.msra.mxu0 0.0
  %134 = vmatprep.subr.mxu0 0.0
  %135 = vmatpush1.msra.mxu0 0.0
  %136 = vmatprep.subr.mxu0 0.0
  %137 = vmatpush1.msra.mxu0 0.0
  %138 = vmatprep.subr.mxu0 0.0
  %139 = vmatpush1.msra.mxu0 0.0
  %140 = vmatprep.subr.mxu0 0.0
  %141 = vmatpush1.msra.mxu0 0.0
  %142 = vmatprep.subr.mxu0 0.0
  %143 = vmatpush1.msra.mxu0 0.0
  %144 = vmatprep.subr.mxu0 0.0
  %145 = vmatpush1.msra.mxu0 0.0
  %146 = vmatprep.subr.mxu0 0.0
  %147 = vmatpush1.msra.mxu0 0.0
  %148 = vmatprep.subr.mxu0 0.0
  %149 = vmatpush1.msra.mxu0 0.0
  %150 = vmatprep.subr.mxu0 0.0
  %151 = vmatpush1.msra.mxu0 0.0
  %152 = vmatprep.subr.mxu0 0.0
  %153 = vmatpush1.msra.mxu0 0.0
  %154 = vmatprep.subr.mxu0 0.0
  %155 = vmatpush1.msra.mxu0 0.0
  %156 = vmatprep.subr.mxu0 0.0
  %157 = vmatpush1.msra.mxu0 0.0
  %158 = vmatprep.subr.mxu0 0.0
  %159 = vmatpush1.msra.mxu0 0.0
  %160 = vmatprep.subr.mxu0 0.0
  %161 = vmatpush1.msra.mxu0 0.0
  %162 = vmatprep.subr.mxu0 0.0
  %163 = vmatpush1.msra.mxu0 0.0
  %164 = vmatprep.subr.mxu0 0.0
  %165 = vmatpush1.msra.mxu0 0.0
  %166 = vmatprep.subr.mxu0 0.0
  %167 = vmatpush1.msra.mxu0 0.0
  %168 = vmatprep.mubr.f32.mxu0 0.0
  %169 = vmatmul.mubr.f32.gmra.mrb[0].mxu0 %v77
  %v170 = vpop.f32.mrb[0].mxu0
  %v171 = vadd.f32 %v73, %v170
  %v172 = vpop.f32.mrb[0].mxu0
  %173 = vmatprep.mubr.f32.mxu0 0.0
  %174 = vmatmul.mubr.f32.gmra.mrb[0].mxu0 %v80
  %v175 = vpop.f32.mrb[0].mxu0
  %v176 = vadd.f32 %v73, %v175
  %v177 = vpop.f32.mrb[0].mxu0
  %178 = vmatprep.mubr.f32.mxu0 0.0
  %179 = vmatmul.mubr.f32.gmra.mrb[0].mxu0 %v83
  %v180 = vpop.f32.mrb[0].mxu0
  %v181 = vadd.f32 %v73, %v180
  %v182 = vpop.f32.mrb[0].mxu0
  %183 = vmatprep.mubr.f32.mxu0 0.0
  %184 = vmatmul.mubr.f32.gmra.mrb[0].mxu0 %v86
  %v185 = vpop.f32.mrb[0].mxu0
  %v186 = vadd.f32 %v73, %v185
  %v187 = vpop.f32.mrb[0].mxu0
  %188 = vmatprep.mubr.f32.mxu0 0.0
  %189 = vmatmul.mubr.f32.gmra.mrb[0].mxu0 %v89
  %v190 = vpop.f32.mrb[0].mxu0
  %v191 = vadd.f32 %v73, %v190
  %v192 = vpop.f32.mrb[0].mxu0
  %193 = vmatprep.mubr.f32.mxu0 0.0
  %194 = vmatmul.mubr.f32.gmra.mrb[0].mxu0 %v92
  %v195 = vpop.f32.mrb[0].mxu0
  %v196 = vadd.f32 %v73, %v195
  %v197 = vpop.f32.mrb[0].mxu0
  %198 = vmatprep.mubr.f32.mxu0 0.0
  %199 = vmatmul.mubr.f32.gmra.mrb[0].mxu0 %v95
  %v200 = vpop.f32.mrb[0].mxu0
  %v201 = vadd.f32 %v73, %v200
  %v202 = vpop.f32.mrb[0].mxu0
  %203 = vmatprep.mubr.f32.mxu0 0.0
  %204 = vmatmul.mubr.f32.gmra.mrb[0].mxu0 %v98
  %v205 = vpop.f32.mrb[0].mxu0
  %v206 = vadd.f32 %v73, %v205
  %v207 = vpop.f32.mrb[0].mxu0
  %208 = vdwg.mxu0
  %vm209 = vcmask 261120
  %v211 = vsel %vm209, 0.0, 0
  %213 = vmatprep.subr.mxu0 0.0
  %214 = vmatpush1.msra.mxu0 %v55
  %215 = vmatprep.subr.mxu0 0.0
  %216 = vmatpush1.msra.mxu0 %v56
  %217 = vmatprep.subr.mxu0 0.0
  %218 = vmatpush1.msra.mxu0 %v57
  %219 = vmatprep.subr.mxu0 0.0
  %220 = vmatpush1.msra.mxu0 %v58
  %221 = vmatprep.subr.mxu0 0.0
  %222 = vmatpush1.msra.mxu0 0.0
  %223 = vmatprep.subr.mxu0 0.0
  %224 = vmatpush1.msra.mxu0 0.0
  %225 = vmatprep.subr.mxu0 0.0
  %226 = vmatpush1.msra.mxu0 0.0
  %227 = vmatprep.subr.mxu0 0.0
  %228 = vmatpush1.msra.mxu0 0.0
  %229 = vmatprep.subr.mxu0 0.0
  %230 = vmatpush1.msra.mxu0 0.0
  %231 = vmatprep.subr.mxu0 0.0
  %232 = vmatpush1.msra.mxu0 0.0
  %233 = vmatprep.subr.mxu0 0.0
  %234 = vmatpush1.msra.mxu0 0.0
  %235 = vmatprep.subr.mxu0 0.0
  %236 = vmatpush1.msra.mxu0 0.0
  %237 = vmatprep.subr.mxu0 0.0
  %238 = vmatpush1.msra.mxu0 0.0
  %239 = vmatprep.subr.mxu0 0.0
  %240 = vmatpush1.msra.mxu0 0.0
  %241 = vmatprep.subr.mxu0 0.0
  %242 = vmatpush1.msra.mxu0 0.0
  %243 = vmatprep.subr.mxu0 0.0
  %244 = vmatpush1.msra.mxu0 0.0
  %245 = vmatprep.subr.mxu0 0.0
  %246 = vmatpush1.msra.mxu0 0.0
  %247 = vmatprep.subr.mxu0 0.0
  %248 = vmatpush1.msra.mxu0 0.0
  %249 = vmatprep.subr.mxu0 0.0
  %250 = vmatpush1.msra.mxu0 0.0
  %251 = vmatprep.subr.mxu0 0.0
  %252 = vmatpush1.msra.mxu0 0.0
  %253 = vmatprep.subr.mxu0 0.0
  %254 = vmatpush1.msra.mxu0 0.0
  %255 = vmatprep.subr.mxu0 0.0
  %256 = vmatpush1.msra.mxu0 0.0
  %257 = vmatprep.subr.mxu0 0.0
  %258 = vmatpush1.msra.mxu0 0.0
  %259 = vmatprep.subr.mxu0 0.0
  %260 = vmatpush1.msra.mxu0 0.0
  %261 = vmatprep.subr.mxu0 0.0
  %262 = vmatpush1.msra.mxu0 0.0
  %263 = vmatprep.subr.mxu0 0.0
  %264 = vmatpush1.msra.mxu0 0.0
  %265 = vmatprep.subr.mxu0 0.0
  %266 = vmatpush1.msra.mxu0 0.0
  %267 = vmatprep.subr.mxu0 0.0
  %268 = vmatpush1.msra.mxu0 0.0
  %269 = vmatprep.subr.mxu0 0.0
  %270 = vmatpush1.msra.mxu0 0.0
  %271 = vmatprep.subr.mxu0 0.0
  %272 = vmatpush1.msra.mxu0 0.0
  %273 = vmatprep.subr.mxu0 0.0
  %274 = vmatpush1.msra.mxu0 0.0
  %275 = vmatprep.subr.mxu0 0.0
  %276 = vmatpush1.msra.mxu0 0.0
  %277 = vmatprep.mubr.f32.mxu0 0.0
  %278 = vmatmul.mubr.f32.gmra.mrb[0].mxu0 %v211
  %v279 = vpop.f32.mrb[0].mxu0
  %v280 = vadd.f32 0.0, %v279
  %v281 = vpop.f32.mrb[0].mxu0
  %282 = vdwg.mxu0
  %v283 = vadd.f32 %v171, %v280
  %v284 = vxor.u32 %v283, 2147483648
  %v285 = vmul.f32 %v284, 1.442695
  %v286 = vpow.pop %v285
  %v287 = vadd.f32 %v286, 1.0
  %v288 = vrcp.pop %v287
  %v289 = vmul.f32 1.0, %v288
  %v290 = vtanh.pop %v283
  %v291 = vmul.f32 %v289, 0.0
  %293 = vrot.lane.b32.xlu0 %v290, 64
  %v294 = vpop.permute.xlu0 %293
  %v296 = vmul.f32 %v289, %v294
  %298 = vrot.lane.b32.xlu0 %v296, 32
  %v299 = vpop.permute.xlu0 %298
  %v301 = vadd.f32 %v291, %v299
  %v302 = vtanh.pop %v301
  %304 = vrot.lane.b32.xlu0 %v302, 64
  %v305 = vpop.permute.xlu0 %304
  %v307 = vmul.f32 %v289, %v305
  %309 = vrot.lane.b32.xlu0 %v307, 32
  %v310 = vpop.permute.xlu0 %309
  %v311 = vsel %vm209, %v310, 0
  %313 = vmatprep.subr.mxu0 0.0
  %314 = vmatpush1.msra.mxu0 %v55
  %315 = vmatprep.subr.mxu0 0.0
  %316 = vmatpush1.msra.mxu0 %v56
  %317 = vmatprep.subr.mxu0 0.0
  %318 = vmatpush1.msra.mxu0 %v57
  %319 = vmatprep.subr.mxu0 0.0
  %320 = vmatpush1.msra.mxu0 %v58
  %321 = vmatprep.subr.mxu0 0.0
  %322 = vmatpush1.msra.mxu0 0.0
  %323 = vmatprep.subr.mxu0 0.0
  %324 = vmatpush1.msra.mxu0 0.0
  %325 = vmatprep.subr.mxu0 0.0
  %326 = vmatpush1.msra.mxu0 0.0
  %327 = vmatprep.subr.mxu0 0.0
  %328 = vmatpush1.msra.mxu0 0.0
  %329 = vmatprep.subr.mxu0 0.0
  %330 = vmatpush1.msra.mxu0 0.0
  %331 = vmatprep.subr.mxu0 0.0
  %332 = vmatpush1.msra.mxu0 0.0
  %333 = vmatprep.subr.mxu0 0.0
  %334 = vmatpush1.msra.mxu0 0.0
  %335 = vmatprep.subr.mxu0 0.0
  %336 = vmatpush1.msra.mxu0 0.0
  %337 = vmatprep.subr.mxu0 0.0
  %338 = vmatpush1.msra.mxu0 0.0
  %339 = vmatprep.subr.mxu0 0.0
  %340 = vmatpush1.msra.mxu0 0.0
  %341 = vmatprep.subr.mxu0 0.0
  %342 = vmatpush1.msra.mxu0 0.0
  %343 = vmatprep.subr.mxu0 0.0
  %344 = vmatpush1.msra.mxu0 0.0
  %345 = vmatprep.subr.mxu0 0.0
  %346 = vmatpush1.msra.mxu0 0.0
  %347 = vmatprep.subr.mxu0 0.0
  %348 = vmatpush1.msra.mxu0 0.0
  %349 = vmatprep.subr.mxu0 0.0
  %350 = vmatpush1.msra.mxu0 0.0
  %351 = vmatprep.subr.mxu0 0.0
  %352 = vmatpush1.msra.mxu0 0.0
  %353 = vmatprep.subr.mxu0 0.0
  %354 = vmatpush1.msra.mxu0 0.0
  %355 = vmatprep.subr.mxu0 0.0
  %356 = vmatpush1.msra.mxu0 0.0
  %357 = vmatprep.subr.mxu0 0.0
  %358 = vmatpush1.msra.mxu0 0.0
  %359 = vmatprep.subr.mxu0 0.0
  %360 = vmatpush1.msra.mxu0 0.0
  %361 = vmatprep.subr.mxu0 0.0
  %362 = vmatpush1.msra.mxu0 0.0
  %363 = vmatprep.subr.mxu0 0.0
  %364 = vmatpush1.msra.mxu0 0.0
  %365 = vmatprep.subr.mxu0 0.0
  %366 = vmatpush1.msra.mxu0 0.0
  %367 = vmatprep.subr.mxu0 0.0
  %368 = vmatpush1.msra.mxu0 0.0
  %369 = vmatprep.subr.mxu0 0.0
  %370 = vmatpush1.msra.mxu0 0.0
  %371 = vmatprep.subr.mxu0 0.0
  %372 = vmatpush1.msra.mxu0 0.0
  %373 = vmatprep.subr.mxu0 0.0
  %374 = vmatpush1.msra.mxu0 0.0
  %375 = vmatprep.subr.mxu0 0.0
  %376 = vmatpush1.msra.mxu0 0.0
  %377 = vmatprep.mubr.f32.mxu0 0.0
  %378 = vmatmul.mubr.f32.gmra.mrb[0].mxu0 %v311
  %v379 = vpop.f32.mrb[0].mxu0
  %v380 = vadd.f32 0.0, %v379
  %v381 = vpop.f32.mrb[0].mxu0
  %382 = vdwg.mxu0
  %v383 = vadd.f32 %v176, %v380
  %v384 = vxor.u32 %v383, 2147483648
  %v385 = vmul.f32 %v384, 1.442695
  %v386 = vpow.pop %v385
  %v387 = vadd.f32 %v386, 1.0
  %v388 = vrcp.pop %v387
  %v389 = vmul.f32 1.0, %v388
  %v390 = vtanh.pop %v383
  %v391 = vmul.f32 %v389, %v301
  %393 = vrot.lane.b32.xlu0 %v390, 64
  %v394 = vpop.permute.xlu0 %393
  %v396 = vmul.f32 %v389, %v394
  %398 = vrot.lane.b32.xlu0 %v396, 32
  %v399 = vpop.permute.xlu0 %398
  %v401 = vadd.f32 %v391, %v399
  %v402 = vtanh.pop %v401
  %404 = vrot.lane.b32.xlu0 %v402, 64
  %v405 = vpop.permute.xlu0 %404
  %v407 = vmul.f32 %v389, %v405
  %409 = vrot.lane.b32.xlu0 %v407, 32
  %v410 = vpop.permute.xlu0 %409
  %v411 = vsel %vm209, %v410, 0
  %413 = vmatprep.subr.mxu0 0.0
  %414 = vmatpush1.msra.mxu0 %v55
  %415 = vmatprep.subr.mxu0 0.0
  %416 = vmatpush1.msra.mxu0 %v56
  %417 = vmatprep.subr.mxu0 0.0
  %418 = vmatpush1.msra.mxu0 %v57
  %419 = vmatprep.subr.mxu0 0.0
  %420 = vmatpush1.msra.mxu0 %v58
  %421 = vmatprep.subr.mxu0 0.0
  %422 = vmatpush1.msra.mxu0 0.0
  %423 = vmatprep.subr.mxu0 0.0
  %424 = vmatpush1.msra.mxu0 0.0
  %425 = vmatprep.subr.mxu0 0.0
  %426 = vmatpush1.msra.mxu0 0.0
  %427 = vmatprep.subr.mxu0 0.0
  %428 = vmatpush1.msra.mxu0 0.0
  %429 = vmatprep.subr.mxu0 0.0
  %430 = vmatpush1.msra.mxu0 0.0
  %431 = vmatprep.subr.mxu0 0.0
  %432 = vmatpush1.msra.mxu0 0.0
  %433 = vmatprep.subr.mxu0 0.0
  %434 = vmatpush1.msra.mxu0 0.0
  %435 = vmatprep.subr.mxu0 0.0
  %436 = vmatpush1.msra.mxu0 0.0
  %437 = vmatprep.subr.mxu0 0.0
  %438 = vmatpush1.msra.mxu0 0.0
  %439 = vmatprep.subr.mxu0 0.0
  %440 = vmatpush1.msra.mxu0 0.0
  %441 = vmatprep.subr.mxu0 0.0
  %442 = vmatpush1.msra.mxu0 0.0
  %443 = vmatprep.subr.mxu0 0.0
  %444 = vmatpush1.msra.mxu0 0.0
  %445 = vmatprep.subr.mxu0 0.0
  %446 = vmatpush1.msra.mxu0 0.0
  %447 = vmatprep.subr.mxu0 0.0
  %448 = vmatpush1.msra.mxu0 0.0
  %449 = vmatprep.subr.mxu0 0.0
  %450 = vmatpush1.msra.mxu0 0.0
  %451 = vmatprep.subr.mxu0 0.0
  %452 = vmatpush1.msra.mxu0 0.0
  %453 = vmatprep.subr.mxu0 0.0
  %454 = vmatpush1.msra.mxu0 0.0
  %455 = vmatprep.subr.mxu0 0.0
  %456 = vmatpush1.msra.mxu0 0.0
  %457 = vmatprep.subr.mxu0 0.0
  %458 = vmatpush1.msra.mxu0 0.0
  %459 = vmatprep.subr.mxu0 0.0
  %460 = vmatpush1.msra.mxu0 0.0
  %461 = vmatprep.subr.mxu0 0.0
  %462 = vmatpush1.msra.mxu0 0.0
  %463 = vmatprep.subr.mxu0 0.0
  %464 = vmatpush1.msra.mxu0 0.0
  %465 = vmatprep.subr.mxu0 0.0
  %466 = vmatpush1.msra.mxu0 0.0
  %467 = vmatprep.subr.mxu0 0.0
  %468 = vmatpush1.msra.mxu0 0.0
  %469 = vmatprep.subr.mxu0 0.0
  %470 = vmatpush1.msra.mxu0 0.0
  %471 = vmatprep.subr.mxu0 0.0
  %472 = vmatpush1.msra.mxu0 0.0
  %473 = vmatprep.subr.mxu0 0.0
  %474 = vmatpush1.msra.mxu0 0.0
  %475 = vmatprep.subr.mxu0 0.0
  %476 = vmatpush1.msra.mxu0 0.0
  %477 = vmatprep.mubr.f32.mxu0 0.0
  %478 = vmatmul.mubr.f32.gmra.mrb[0].mxu0 %v411
  %v479 = vpop.f32.mrb[0].mxu0
  %v480 = vadd.f32 0.0, %v479
  %v481 = vpop.f32.mrb[0].mxu0
  %482 = vdwg.mxu0
  %v483 = vadd.f32 %v181, %v480
  %v484 = vxor.u32 %v483, 2147483648
  %v485 = vmul.f32 %v484, 1.442695
  %v486 = vpow.pop %v485
  %v487 = vadd.f32 %v486, 1.0
  %v488 = vrcp.pop %v487
  %v489 = vmul.f32 1.0, %v488
  %v490 = vtanh.pop %v483
  %v491 = vmul.f32 %v489, %v401
  %493 = vrot.lane.b32.xlu0 %v490, 64
  %v494 = vpop.permute.xlu0 %493
  %v496 = vmul.f32 %v489, %v494
  %498 = vrot.lane.b32.xlu0 %v496, 32
  %v499 = vpop.permute.xlu0 %498
  %v501 = vadd.f32 %v491, %v499
  %v502 = vtanh.pop %v501
  %504 = vrot.lane.b32.xlu0 %v502, 64
  %v505 = vpop.permute.xlu0 %504
  %v507 = vmul.f32 %v489, %v505
  %509 = vrot.lane.b32.xlu0 %v507, 32
  %v510 = vpop.permute.xlu0 %509
  %v511 = vsel %vm209, %v510, 0
  %513 = vmatprep.subr.mxu0 0.0
  %514 = vmatpush1.msra.mxu0 %v55
  %515 = vmatprep.subr.mxu0 0.0
  %516 = vmatpush1.msra.mxu0 %v56
  %517 = vmatprep.subr.mxu0 0.0
  %518 = vmatpush1.msra.mxu0 %v57
  %519 = vmatprep.subr.mxu0 0.0
  %520 = vmatpush1.msra.mxu0 %v58
  %521 = vmatprep.subr.mxu0 0.0
  %522 = vmatpush1.msra.mxu0 0.0
  %523 = vmatprep.subr.mxu0 0.0
  %524 = vmatpush1.msra.mxu0 0.0
  %525 = vmatprep.subr.mxu0 0.0
  %526 = vmatpush1.msra.mxu0 0.0
  %527 = vmatprep.subr.mxu0 0.0
  %528 = vmatpush1.msra.mxu0 0.0
  %529 = vmatprep.subr.mxu0 0.0
  %530 = vmatpush1.msra.mxu0 0.0
  %531 = vmatprep.subr.mxu0 0.0
  %532 = vmatpush1.msra.mxu0 0.0
  %533 = vmatprep.subr.mxu0 0.0
  %534 = vmatpush1.msra.mxu0 0.0
  %535 = vmatprep.subr.mxu0 0.0
  %536 = vmatpush1.msra.mxu0 0.0
  %537 = vmatprep.subr.mxu0 0.0
  %538 = vmatpush1.msra.mxu0 0.0
  %539 = vmatprep.subr.mxu0 0.0
  %540 = vmatpush1.msra.mxu0 0.0
  %541 = vmatprep.subr.mxu0 0.0
  %542 = vmatpush1.msra.mxu0 0.0
  %543 = vmatprep.subr.mxu0 0.0
  %544 = vmatpush1.msra.mxu0 0.0
  %545 = vmatprep.subr.mxu0 0.0
  %546 = vmatpush1.msra.mxu0 0.0
  %547 = vmatprep.subr.mxu0 0.0
  %548 = vmatpush1.msra.mxu0 0.0
  %549 = vmatprep.subr.mxu0 0.0
  %550 = vmatpush1.msra.mxu0 0.0
  %551 = vmatprep.subr.mxu0 0.0
  %552 = vmatpush1.msra.mxu0 0.0
  %553 = vmatprep.subr.mxu0 0.0
  %554 = vmatpush1.msra.mxu0 0.0
  %555 = vmatprep.subr.mxu0 0.0
  %556 = vmatpush1.msra.mxu0 0.0
  %557 = vmatprep.subr.mxu0 0.0
  %558 = vmatpush1.msra.mxu0 0.0
  %559 = vmatprep.subr.mxu0 0.0
  %560 = vmatpush1.msra.mxu0 0.0
  %561 = vmatprep.subr.mxu0 0.0
  %562 = vmatpush1.msra.mxu0 0.0
  %563 = vmatprep.subr.mxu0 0.0
  %564 = vmatpush1.msra.mxu0 0.0
  %565 = vmatprep.subr.mxu0 0.0
  %566 = vmatpush1.msra.mxu0 0.0
  %567 = vmatprep.subr.mxu0 0.0
  %568 = vmatpush1.msra.mxu0 0.0
  %569 = vmatprep.subr.mxu0 0.0
  %570 = vmatpush1.msra.mxu0 0.0
  %571 = vmatprep.subr.mxu0 0.0
  %572 = vmatpush1.msra.mxu0 0.0
  %573 = vmatprep.subr.mxu0 0.0
  %574 = vmatpush1.msra.mxu0 0.0
  %575 = vmatprep.subr.mxu0 0.0
  %576 = vmatpush1.msra.mxu0 0.0
  %577 = vmatprep.mubr.f32.mxu0 0.0
  %578 = vmatmul.mubr.f32.gmra.mrb[0].mxu0 %v511
  %v579 = vpop.f32.mrb[0].mxu0
  %v580 = vadd.f32 0.0, %v579
  %v581 = vpop.f32.mrb[0].mxu0
  %582 = vdwg.mxu0
  %v583 = vadd.f32 %v186, %v580
  %v584 = vxor.u32 %v583, 2147483648
  %v585 = vmul.f32 %v584, 1.442695
  %v586 = vpow.pop %v585
  %v587 = vadd.f32 %v586, 1.0
  %v588 = vrcp.pop %v587
  %v589 = vmul.f32 1.0, %v588
  %v590 = vtanh.pop %v583
  %v591 = vmul.f32 %v589, %v501
  %593 = vrot.lane.b32.xlu0 %v590, 64
  %v594 = vpop.permute.xlu0 %593
  %v596 = vmul.f32 %v589, %v594
  %598 = vrot.lane.b32.xlu0 %v596, 32
  %v599 = vpop.permute.xlu0 %598
  %v601 = vadd.f32 %v591, %v599
  %v602 = vtanh.pop %v601
  %604 = vrot.lane.b32.xlu0 %v602, 64
  %v605 = vpop.permute.xlu0 %604
  %v607 = vmul.f32 %v589, %v605
  %609 = vrot.lane.b32.xlu0 %v607, 32
  %v610 = vpop.permute.xlu0 %609
  %v611 = vsel %vm209, %v610, 0
  %613 = vmatprep.subr.mxu0 0.0
  %614 = vmatpush1.msra.mxu0 %v55
  %615 = vmatprep.subr.mxu0 0.0
  %616 = vmatpush1.msra.mxu0 %v56
  %617 = vmatprep.subr.mxu0 0.0
  %618 = vmatpush1.msra.mxu0 %v57
  %619 = vmatprep.subr.mxu0 0.0
  %620 = vmatpush1.msra.mxu0 %v58
  %621 = vmatprep.subr.mxu0 0.0
  %622 = vmatpush1.msra.mxu0 0.0
  %623 = vmatprep.subr.mxu0 0.0
  %624 = vmatpush1.msra.mxu0 0.0
  %625 = vmatprep.subr.mxu0 0.0
  %626 = vmatpush1.msra.mxu0 0.0
  %627 = vmatprep.subr.mxu0 0.0
  %628 = vmatpush1.msra.mxu0 0.0
  %629 = vmatprep.subr.mxu0 0.0
  %630 = vmatpush1.msra.mxu0 0.0
  %631 = vmatprep.subr.mxu0 0.0
  %632 = vmatpush1.msra.mxu0 0.0
  %633 = vmatprep.subr.mxu0 0.0
  %634 = vmatpush1.msra.mxu0 0.0
  %635 = vmatprep.subr.mxu0 0.0
  %636 = vmatpush1.msra.mxu0 0.0
  %637 = vmatprep.subr.mxu0 0.0
  %638 = vmatpush1.msra.mxu0 0.0
  %639 = vmatprep.subr.mxu0 0.0
  %640 = vmatpush1.msra.mxu0 0.0
  %641 = vmatprep.subr.mxu0 0.0
  %642 = vmatpush1.msra.mxu0 0.0
  %643 = vmatprep.subr.mxu0 0.0
  %644 = vmatpush1.msra.mxu0 0.0
  %645 = vmatprep.subr.mxu0 0.0
  %646 = vmatpush1.msra.mxu0 0.0
  %647 = vmatprep.subr.mxu0 0.0
  %648 = vmatpush1.msra.mxu0 0.0
  %649 = vmatprep.subr.mxu0 0.0
  %650 = vmatpush1.msra.mxu0 0.0
  %651 = vmatprep.subr.mxu0 0.0
  %652 = vmatpush1.msra.mxu0 0.0
  %653 = vmatprep.subr.mxu0 0.0
  %654 = vmatpush1.msra.mxu0 0.0
  %655 = vmatprep.subr.mxu0 0.0
  %656 = vmatpush1.msra.mxu0 0.0
  %657 = vmatprep.subr.mxu0 0.0
  %658 = vmatpush1.msra.mxu0 0.0
  %659 = vmatprep.subr.mxu0 0.0
  %660 = vmatpush1.msra.mxu0 0.0
  %661 = vmatprep.subr.mxu0 0.0
  %662 = vmatpush1.msra.mxu0 0.0
  %663 = vmatprep.subr.mxu0 0.0
  %664 = vmatpush1.msra.mxu0 0.0
  %665 = vmatprep.subr.mxu0 0.0
  %666 = vmatpush1.msra.mxu0 0.0
  %667 = vmatprep.subr.mxu0 0.0
  %668 = vmatpush1.msra.mxu0 0.0
  %669 = vmatprep.subr.mxu0 0.0
  %670 = vmatpush1.msra.mxu0 0.0
  %671 = vmatprep.subr.mxu0 0.0
  %672 = vmatpush1.msra.mxu0 0.0
  %673 = vmatprep.subr.mxu0 0.0
  %674 = vmatpush1.msra.mxu0 0.0
  %675 = vmatprep.subr.mxu0 0.0
  %676 = vmatpush1.msra.mxu0 0.0
  %677 = vmatprep.mubr.f32.mxu0 0.0
  %678 = vmatmul.mubr.f32.gmra.mrb[0].mxu0 %v611
  %v679 = vpop.f32.mrb[0].mxu0
  %v680 = vadd.f32 0.0, %v679
  %v681 = vpop.f32.mrb[0].mxu0
  %682 = vdwg.mxu0
  %v683 = vadd.f32 %v191, %v680
  %v684 = vxor.u32 %v683, 2147483648
  %v685 = vmul.f32 %v684, 1.442695
  %v686 = vpow.pop %v685
  %v687 = vadd.f32 %v686, 1.0
  %v688 = vrcp.pop %v687
  %v689 = vmul.f32 1.0, %v688
  %v690 = vtanh.pop %v683
  %v691 = vmul.f32 %v689, %v601
  %693 = vrot.lane.b32.xlu0 %v690, 64
  %v694 = vpop.permute.xlu0 %693
  %v696 = vmul.f32 %v689, %v694
  %698 = vrot.lane.b32.xlu0 %v696, 32
  %v699 = vpop.permute.xlu0 %698
  %v701 = vadd.f32 %v691, %v699
  %v702 = vtanh.pop %v701
  %704 = vrot.lane.b32.xlu0 %v702, 64
  %v705 = vpop.permute.xlu0 %704
  %v707 = vmul.f32 %v689, %v705
  %709 = vrot.lane.b32.xlu0 %v707, 32
  %v710 = vpop.permute.xlu0 %709
  %v711 = vsel %vm209, %v710, 0
  %713 = vmatprep.subr.mxu0 0.0
  %714 = vmatpush1.msra.mxu0 %v55
  %715 = vmatprep.subr.mxu0 0.0
  %716 = vmatpush1.msra.mxu0 %v56
  %717 = vmatprep.subr.mxu0 0.0
  %718 = vmatpush1.msra.mxu0 %v57
  %719 = vmatprep.subr.mxu0 0.0
  %720 = vmatpush1.msra.mxu0 %v58
  %721 = vmatprep.subr.mxu0 0.0
  %722 = vmatpush1.msra.mxu0 0.0
  %723 = vmatprep.subr.mxu0 0.0
  %724 = vmatpush1.msra.mxu0 0.0
  %725 = vmatprep.subr.mxu0 0.0
  %726 = vmatpush1.msra.mxu0 0.0
  %727 = vmatprep.subr.mxu0 0.0
  %728 = vmatpush1.msra.mxu0 0.0
  %729 = vmatprep.subr.mxu0 0.0
  %730 = vmatpush1.msra.mxu0 0.0
  %731 = vmatprep.subr.mxu0 0.0
  %732 = vmatpush1.msra.mxu0 0.0
  %733 = vmatprep.subr.mxu0 0.0
  %734 = vmatpush1.msra.mxu0 0.0
  %735 = vmatprep.subr.mxu0 0.0
  %736 = vmatpush1.msra.mxu0 0.0
  %737 = vmatprep.subr.mxu0 0.0
  %738 = vmatpush1.msra.mxu0 0.0
  %739 = vmatprep.subr.mxu0 0.0
  %740 = vmatpush1.msra.mxu0 0.0
  %741 = vmatprep.subr.mxu0 0.0
  %742 = vmatpush1.msra.mxu0 0.0
  %743 = vmatprep.subr.mxu0 0.0
  %744 = vmatpush1.msra.mxu0 0.0
  %745 = vmatprep.subr.mxu0 0.0
  %746 = vmatpush1.msra.mxu0 0.0
  %747 = vmatprep.subr.mxu0 0.0
  %748 = vmatpush1.msra.mxu0 0.0
  %749 = vmatprep.subr.mxu0 0.0
  %750 = vmatpush1.msra.mxu0 0.0
  %751 = vmatprep.subr.mxu0 0.0
  %752 = vmatpush1.msra.mxu0 0.0
  %753 = vmatprep.subr.mxu0 0.0
  %754 = vmatpush1.msra.mxu0 0.0
  %755 = vmatprep.subr.mxu0 0.0
  %756 = vmatpush1.msra.mxu0 0.0
  %757 = vmatprep.subr.mxu0 0.0
  %758 = vmatpush1.msra.mxu0 0.0
  %759 = vmatprep.subr.mxu0 0.0
  %760 = vmatpush1.msra.mxu0 0.0
  %761 = vmatprep.subr.mxu0 0.0
  %762 = vmatpush1.msra.mxu0 0.0
  %763 = vmatprep.subr.mxu0 0.0
  %764 = vmatpush1.msra.mxu0 0.0
  %765 = vmatprep.subr.mxu0 0.0
  %766 = vmatpush1.msra.mxu0 0.0
  %767 = vmatprep.subr.mxu0 0.0
  %768 = vmatpush1.msra.mxu0 0.0
  %769 = vmatprep.subr.mxu0 0.0
  %770 = vmatpush1.msra.mxu0 0.0
  %771 = vmatprep.subr.mxu0 0.0
  %772 = vmatpush1.msra.mxu0 0.0
  %773 = vmatprep.subr.mxu0 0.0
  %774 = vmatpush1.msra.mxu0 0.0
  %775 = vmatprep.subr.mxu0 0.0
  %776 = vmatpush1.msra.mxu0 0.0
  %777 = vmatprep.mubr.f32.mxu0 0.0
  %778 = vmatmul.mubr.f32.gmra.mrb[0].mxu0 %v711
  %v779 = vpop.f32.mrb[0].mxu0
  %v780 = vadd.f32 0.0, %v779
  %v781 = vpop.f32.mrb[0].mxu0
  %782 = vdwg.mxu0
  %v783 = vadd.f32 %v196, %v780
  %v784 = vxor.u32 %v783, 2147483648
  %v785 = vmul.f32 %v784, 1.442695
  %v786 = vpow.pop %v785
  %v787 = vadd.f32 %v786, 1.0
  %v788 = vrcp.pop %v787
  %v789 = vmul.f32 1.0, %v788
  %v790 = vtanh.pop %v783
  %v791 = vmul.f32 %v789, %v701
  %793 = vrot.lane.b32.xlu0 %v790, 64
  %v794 = vpop.permute.xlu0 %793
  %v796 = vmul.f32 %v789, %v794
  %798 = vrot.lane.b32.xlu0 %v796, 32
  %v799 = vpop.permute.xlu0 %798
  %v801 = vadd.f32 %v791, %v799
  %v802 = vtanh.pop %v801
  %804 = vrot.lane.b32.xlu0 %v802, 64
  %v805 = vpop.permute.xlu0 %804
  %v807 = vmul.f32 %v789, %v805
  %809 = vrot.lane.b32.xlu0 %v807, 32
  %v810 = vpop.permute.xlu0 %809
  %v811 = vsel %vm209, %v810, 0
  %813 = vmatprep.subr.mxu0 0.0
  %814 = vmatpush1.msra.mxu0 %v55
  %815 = vmatprep.subr.mxu0 0.0
  %816 = vmatpush1.msra.mxu0 %v56
  %817 = vmatprep.subr.mxu0 0.0
  %818 = vmatpush1.msra.mxu0 %v57
  %819 = vmatprep.subr.mxu0 0.0
  %820 = vmatpush1.msra.mxu0 %v58
  %821 = vmatprep.subr.mxu0 0.0
  %822 = vmatpush1.msra.mxu0 0.0
  %823 = vmatprep.subr.mxu0 0.0
  %824 = vmatpush1.msra.mxu0 0.0
  %825 = vmatprep.subr.mxu0 0.0
  %826 = vmatpush1.msra.mxu0 0.0
  %827 = vmatprep.subr.mxu0 0.0
  %828 = vmatpush1.msra.mxu0 0.0
  %829 = vmatprep.subr.mxu0 0.0
  %830 = vmatpush1.msra.mxu0 0.0
  %831 = vmatprep.subr.mxu0 0.0
  %832 = vmatpush1.msra.mxu0 0.0
  %833 = vmatprep.subr.mxu0 0.0
  %834 = vmatpush1.msra.mxu0 0.0
  %835 = vmatprep.subr.mxu0 0.0
  %836 = vmatpush1.msra.mxu0 0.0
  %837 = vmatprep.subr.mxu0 0.0
  %838 = vmatpush1.msra.mxu0 0.0
  %839 = vmatprep.subr.mxu0 0.0
  %840 = vmatpush1.msra.mxu0 0.0
  %841 = vmatprep.subr.mxu0 0.0
  %842 = vmatpush1.msra.mxu0 0.0
  %843 = vmatprep.subr.mxu0 0.0
  %844 = vmatpush1.msra.mxu0 0.0
  %845 = vmatprep.subr.mxu0 0.0
  %846 = vmatpush1.msra.mxu0 0.0
  %847 = vmatprep.subr.mxu0 0.0
  %848 = vmatpush1.msra.mxu0 0.0
  %849 = vmatprep.subr.mxu0 0.0
  %850 = vmatpush1.msra.mxu0 0.0
  %851 = vmatprep.subr.mxu0 0.0
  %852 = vmatpush1.msra.mxu0 0.0
  %853 = vmatprep.subr.mxu0 0.0
  %854 = vmatpush1.msra.mxu0 0.0
  %855 = vmatprep.subr.mxu0 0.0
  %856 = vmatpush1.msra.mxu0 0.0
  %857 = vmatprep.subr.mxu0 0.0
  %858 = vmatpush1.msra.mxu0 0.0
  %859 = vmatprep.subr.mxu0 0.0
  %860 = vmatpush1.msra.mxu0 0.0
  %861 = vmatprep.subr.mxu0 0.0
  %862 = vmatpush1.msra.mxu0 0.0
  %863 = vmatprep.subr.mxu0 0.0
  %864 = vmatpush1.msra.mxu0 0.0
  %865 = vmatprep.subr.mxu0 0.0
  %866 = vmatpush1.msra.mxu0 0.0
  %867 = vmatprep.subr.mxu0 0.0
  %868 = vmatpush1.msra.mxu0 0.0
  %869 = vmatprep.subr.mxu0 0.0
  %870 = vmatpush1.msra.mxu0 0.0
  %871 = vmatprep.subr.mxu0 0.0
  %872 = vmatpush1.msra.mxu0 0.0
  %873 = vmatprep.subr.mxu0 0.0
  %874 = vmatpush1.msra.mxu0 0.0
  %875 = vmatprep.subr.mxu0 0.0
  %876 = vmatpush1.msra.mxu0 0.0
  %877 = vmatprep.mubr.f32.mxu0 0.0
  %878 = vmatmul.mubr.f32.gmra.mrb[0].mxu0 %v811
  %v879 = vpop.f32.mrb[0].mxu0
  %v880 = vadd.f32 0.0, %v879
  %v881 = vpop.f32.mrb[0].mxu0
  %882 = vdwg.mxu0
  %v883 = vadd.f32 %v201, %v880
  %v884 = vxor.u32 %v883, 2147483648
  %v885 = vmul.f32 %v884, 1.442695
  %v886 = vpow.pop %v885
  %v887 = vadd.f32 %v886, 1.0
  %v888 = vrcp.pop %v887
  %v889 = vmul.f32 1.0, %v888
  %v890 = vtanh.pop %v883
  %v891 = vmul.f32 %v889, %v801
  %893 = vrot.lane.b32.xlu0 %v890, 64
  %v894 = vpop.permute.xlu0 %893
  %v896 = vmul.f32 %v889, %v894
  %898 = vrot.lane.b32.xlu0 %v896, 32
  %v899 = vpop.permute.xlu0 %898
  %v901 = vadd.f32 %v891, %v899
  %v902 = vtanh.pop %v901
  %904 = vrot.lane.b32.xlu0 %v902, 64
  %v905 = vpop.permute.xlu0 %904
  %v907 = vmul.f32 %v889, %v905
  %909 = vrot.lane.b32.xlu0 %v907, 32
  %v910 = vpop.permute.xlu0 %909
  %v911 = vsel %vm209, %v910, 0
  %913 = vmatprep.subr.mxu0 0.0
  %914 = vmatpush1.msra.mxu0 %v55
  %915 = vmatprep.subr.mxu0 0.0
  %916 = vmatpush1.msra.mxu0 %v56
  %917 = vmatprep.subr.mxu0 0.0
  %918 = vmatpush1.msra.mxu0 %v57
  %919 = vmatprep.subr.mxu0 0.0
  %920 = vmatpush1.msra.mxu0 %v58
  %921 = vmatprep.subr.mxu0 0.0
  %922 = vmatpush1.msra.mxu0 0.0
  %923 = vmatprep.subr.mxu0 0.0
  %924 = vmatpush1.msra.mxu0 0.0
  %925 = vmatprep.subr.mxu0 0.0
  %926 = vmatpush1.msra.mxu0 0.0
  %927 = vmatprep.subr.mxu0 0.0
  %928 = vmatpush1.msra.mxu0 0.0
  %929 = vmatprep.subr.mxu0 0.0
  %930 = vmatpush1.msra.mxu0 0.0
  %931 = vmatprep.subr.mxu0 0.0
  %932 = vmatpush1.msra.mxu0 0.0
  %933 = vmatprep.subr.mxu0 0.0
  %934 = vmatpush1.msra.mxu0 0.0
  %935 = vmatprep.subr.mxu0 0.0
  %936 = vmatpush1.msra.mxu0 0.0
  %937 = vmatprep.subr.mxu0 0.0
  %938 = vmatpush1.msra.mxu0 0.0
  %939 = vmatprep.subr.mxu0 0.0
  %940 = vmatpush1.msra.mxu0 0.0
  %941 = vmatprep.subr.mxu0 0.0
  %942 = vmatpush1.msra.mxu0 0.0
  %943 = vmatprep.subr.mxu0 0.0
  %944 = vmatpush1.msra.mxu0 0.0
  %945 = vmatprep.subr.mxu0 0.0
  %946 = vmatpush1.msra.mxu0 0.0
  %947 = vmatprep.subr.mxu0 0.0
  %948 = vmatpush1.msra.mxu0 0.0
  %949 = vmatprep.subr.mxu0 0.0
  %950 = vmatpush1.msra.mxu0 0.0
  %951 = vmatprep.subr.mxu0 0.0
  %952 = vmatpush1.msra.mxu0 0.0
  %953 = vmatprep.subr.mxu0 0.0
  %954 = vmatpush1.msra.mxu0 0.0
  %955 = vmatprep.subr.mxu0 0.0
  %956 = vmatpush1.msra.mxu0 0.0
  %957 = vmatprep.subr.mxu0 0.0
  %958 = vmatpush1.msra.mxu0 0.0
  %959 = vmatprep.subr.mxu0 0.0
  %960 = vmatpush1.msra.mxu0 0.0
  %961 = vmatprep.subr.mxu0 0.0
  %962 = vmatpush1.msra.mxu0 0.0
  %963 = vmatprep.subr.mxu0 0.0
  %964 = vmatpush1.msra.mxu0 0.0
  %965 = vmatprep.subr.mxu0 0.0
  %966 = vmatpush1.msra.mxu0 0.0
  %967 = vmatprep.subr.mxu0 0.0
  %968 = vmatpush1.msra.mxu0 0.0
  %969 = vmatprep.subr.mxu0 0.0
  %970 = vmatpush1.msra.mxu0 0.0
  %971 = vmatprep.subr.mxu0 0.0
  %972 = vmatpush1.msra.mxu0 0.0
  %973 = vmatprep.subr.mxu0 0.0
  %974 = vmatpush1.msra.mxu0 0.0
  %975 = vmatprep.subr.mxu0 0.0
  %976 = vmatpush1.msra.mxu0 0.0
  %977 = vmatprep.mubr.f32.mxu0 0.0
  %978 = vmatmul.mubr.f32.gmra.mrb[0].mxu0 %v911
  %v979 = vpop.f32.mrb[0].mxu0
  %v980 = vadd.f32 0.0, %v979
  %v981 = vpop.f32.mrb[0].mxu0
  %982 = vdwg.mxu0
  %v983 = vadd.f32 %v206, %v980
  %v984 = vxor.u32 %v983, 2147483648
  %v985 = vmul.f32 %v984, 1.442695
  %v986 = vpow.pop %v985
  %v987 = vadd.f32 %v986, 1.0
  %v988 = vrcp.pop %v987
  %v989 = vmul.f32 1.0, %v988
  %v990 = vtanh.pop %v983
  %v991 = vmul.f32 %v989, %v901
  %993 = vrot.lane.b32.xlu0 %v990, 64
  %v994 = vpop.permute.xlu0 %993
  %v996 = vmul.f32 %v989, %v994
  %998 = vrot.lane.b32.xlu0 %v996, 32
  %v999 = vpop.permute.xlu0 %998
  %v1001 = vadd.f32 %v991, %v999
  %v1002 = vtanh.pop %v1001
  %1004 = vrot.lane.b32.xlu0 %v1002, 64
  %v1005 = vpop.permute.xlu0 %1004
  %v1007 = vmul.f32 %v989, %v1005
  %v1008 = vld [vmem:[%s4] sm:$0xff]
  %v1009 = vld [vmem:[%s4 + $0x8] sm:$0xff]
  %v1010 = vld [vmem:[%s4 + $0x10] sm:$0xff]
  %v1011 = vld [vmem:[%s4 + $0x18] sm:$0xff]
  %v1012 = vld [vmem:[%s5] sm:$0x1]
  %v1014 = vlaneseq
  %v1015 = vshrl.u32 %v1014, 7
  %v1016 = vsub.s32 0, %v1015
  %v1017 = vrot.slane %v1012, %v1016
  %1020 = vrot.lane.b32.xlu0 %v1007, 32
  %v1021 = vpop.permute.xlu0 %1020
  %v1022 = vsel %vm209, %v1021, 0
  %1024 = vmatprep.subr.mxu0 0.0
  %1025 = vmatpush1.msra.mxu0 %v1008
  %1026 = vmatprep.subr.mxu0 0.0
  %1027 = vmatpush1.msra.mxu0 %v1009
  %1028 = vmatprep.subr.mxu0 0.0
  %1029 = vmatpush1.msra.mxu0 %v1010
  %1030 = vmatprep.subr.mxu0 0.0
  %1031 = vmatpush1.msra.mxu0 %v1011
  %1032 = vmatprep.subr.mxu0 0.0
  %1033 = vmatpush1.msra.mxu0 0.0
  %1034 = vmatprep.subr.mxu0 0.0
  %1035 = vmatpush1.msra.mxu0 0.0
  %1036 = vmatprep.subr.mxu0 0.0
  %1037 = vmatpush1.msra.mxu0 0.0
  %1038 = vmatprep.subr.mxu0 0.0
  %1039 = vmatpush1.msra.mxu0 0.0
  %1040 = vmatprep.subr.mxu0 0.0
  %1041 = vmatpush1.msra.mxu0 0.0
  %1042 = vmatprep.subr.mxu0 0.0
  %1043 = vmatpush1.msra.mxu0 0.0
  %1044 = vmatprep.subr.mxu0 0.0
  %1045 = vmatpush1.msra.mxu0 0.0
  %1046 = vmatprep.subr.mxu0 0.0
  %1047 = vmatpush1.msra.mxu0 0.0
  %1048 = vmatprep.subr.mxu0 0.0
  %1049 = vmatpush1.msra.mxu0 0.0
  %1050 = vmatprep.subr.mxu0 0.0
  %1051 = vmatpush1.msra.mxu0 0.0
  %1052 = vmatprep.subr.mxu0 0.0
  %1053 = vmatpush1.msra.mxu0 0.0
  %1054 = vmatprep.subr.mxu0 0.0
  %1055 = vmatpush1.msra.mxu0 0.0
  %1056 = vmatprep.subr.mxu0 0.0
  %1057 = vmatpush1.msra.mxu0 0.0
  %1058 = vmatprep.subr.mxu0 0.0
  %1059 = vmatpush1.msra.mxu0 0.0
  %1060 = vmatprep.subr.mxu0 0.0
  %1061 = vmatpush1.msra.mxu0 0.0
  %1062 = vmatprep.subr.mxu0 0.0
  %1063 = vmatpush1.msra.mxu0 0.0
  %1064 = vmatprep.subr.mxu0 0.0
  %1065 = vmatpush1.msra.mxu0 0.0
  %1066 = vmatprep.subr.mxu0 0.0
  %1067 = vmatpush1.msra.mxu0 0.0
  %1068 = vmatprep.subr.mxu0 0.0
  %1069 = vmatpush1.msra.mxu0 0.0
  %1070 = vmatprep.subr.mxu0 0.0
  %1071 = vmatpush1.msra.mxu0 0.0
  %1072 = vmatprep.subr.mxu0 0.0
  %1073 = vmatpush1.msra.mxu0 0.0
  %1074 = vmatprep.subr.mxu0 0.0
  %1075 = vmatpush1.msra.mxu0 0.0
  %1076 = vmatprep.subr.mxu0 0.0
  %1077 = vmatpush1.msra.mxu0 0.0
  %1078 = vmatprep.subr.mxu0 0.0
  %1079 = vmatpush1.msra.mxu0 0.0
  %1080 = vmatprep.subr.mxu0 0.0
  %1081 = vmatpush1.msra.mxu0 0.0
  %1082 = vmatprep.subr.mxu0 0.0
  %1083 = vmatpush1.msra.mxu0 0.0
  %1084 = vmatprep.subr.mxu0 0.0
  %1085 = vmatpush1.msra.mxu0 0.0
  %1086 = vmatprep.subr.mxu0 0.0
  %1087 = vmatpush1.msra.mxu0 0.0
  %1088 = vmatprep.mubr.f32.mxu0 0.0
  %1089 = vmatmul.mubr.f32.gmra.mrb[0].mxu0 %v1022
  %v1090 = vpop.f32.mrb[0].mxu0
  %v1091 = vadd.f32 %v1017, %v1090
  %v1092 = vpop.f32.mrb[0].mxu0
  %1093 = vdwg.mxu0
  %v1094 = vxor.u32 %v1091, 2147483648
  %v1095 = vmul.f32 %v1094, 1.442695
  %v1096 = vpow.pop %v1095
  %v1097 = vadd.f32 %v1096, 1.0
  %v1098 = vrcp.pop %v1097
  %v1099 = vmul.f32 1.0, %v1098
  %v1100 = vtanh.pop %v1091
  %1102 = vrot.lane.b32.xlu0 %v1100, 64
  %v1103 = vpop.permute.xlu0 %1102
  %v1105 = vmul.f32 %v1099, %v1103
  %v1106 = vtanh.pop %v1105
  %1108 = vrot.lane.b32.xlu0 %v1106, 96
  %v1109 = vpop.permute.xlu0 %1108
  %v1111 = vmul.f32 %v1099, %v1109
  %v1112 = vld [vmem:[%s6] sm:$0xff]
  %v1113 = vld [vmem:[%s6 + $0x8] sm:$0xff]
  %v1114 = vld [vmem:[%s6 + $0x10] sm:$0xff]
  %v1115 = vld [vmem:[%s6 + $0x18] sm:$0xff]
  %v1116 = vld [vmem:[%s7] sm:$0x1]
  %v1118 = vlaneseq
  %v1119 = vshrl.u32 %v1118, 7
  %v1120 = vsub.s32 0, %v1119
  %v1121 = vrot.slane %v1116, %v1120
  %1124 = vrot.lane.b32.xlu0 %v1111, 32
  %v1125 = vpop.permute.xlu0 %1124
  %v1126 = vsel %vm209, %v1125, 0
  %1128 = vmatprep.subr.mxu0 0.0
  %1129 = vmatpush1.msra.mxu0 %v1112
  %1130 = vmatprep.subr.mxu0 0.0
  %1131 = vmatpush1.msra.mxu0 %v1113
  %1132 = vmatprep.subr.mxu0 0.0
  %1133 = vmatpush1.msra.mxu0 %v1114
  %1134 = vmatprep.subr.mxu0 0.0
  %1135 = vmatpush1.msra.mxu0 %v1115
  %1136 = vmatprep.subr.mxu0 0.0
  %1137 = vmatpush1.msra.mxu0 0.0
  %1138 = vmatprep.subr.mxu0 0.0
  %1139 = vmatpush1.msra.mxu0 0.0
  %1140 = vmatprep.subr.mxu0 0.0
  %1141 = vmatpush1.msra.mxu0 0.0
  %1142 = vmatprep.subr.mxu0 0.0
  %1143 = vmatpush1.msra.mxu0 0.0
  %1144 = vmatprep.subr.mxu0 0.0
  %1145 = vmatpush1.msra.mxu0 0.0
  %1146 = vmatprep.subr.mxu0 0.0
  %1147 = vmatpush1.msra.mxu0 0.0
  %1148 = vmatprep.subr.mxu0 0.0
  %1149 = vmatpush1.msra.mxu0 0.0
  %1150 = vmatprep.subr.mxu0 0.0
  %1151 = vmatpush1.msra.mxu0 0.0
  %1152 = vmatprep.subr.mxu0 0.0
  %1153 = vmatpush1.msra.mxu0 0.0
  %1154 = vmatprep.subr.mxu0 0.0
  %1155 = vmatpush1.msra.mxu0 0.0
  %1156 = vmatprep.subr.mxu0 0.0
  %1157 = vmatpush1.msra.mxu0 0.0
  %1158 = vmatprep.subr.mxu0 0.0
  %1159 = vmatpush1.msra.mxu0 0.0
  %1160 = vmatprep.subr.mxu0 0.0
  %1161 = vmatpush1.msra.mxu0 0.0
  %1162 = vmatprep.subr.mxu0 0.0
  %1163 = vmatpush1.msra.mxu0 0.0
  %1164 = vmatprep.subr.mxu0 0.0
  %1165 = vmatpush1.msra.mxu0 0.0
  %1166 = vmatprep.subr.mxu0 0.0
  %1167 = vmatpush1.msra.mxu0 0.0
  %1168 = vmatprep.subr.mxu0 0.0
  %1169 = vmatpush1.msra.mxu0 0.0
  %1170 = vmatprep.subr.mxu0 0.0
  %1171 = vmatpush1.msra.mxu0 0.0
  %1172 = vmatprep.subr.mxu0 0.0
  %1173 = vmatpush1.msra.mxu0 0.0
  %1174 = vmatprep.subr.mxu0 0.0
  %1175 = vmatpush1.msra.mxu0 0.0
  %1176 = vmatprep.subr.mxu0 0.0
  %1177 = vmatpush1.msra.mxu0 0.0
  %1178 = vmatprep.subr.mxu0 0.0
  %1179 = vmatpush1.msra.mxu0 0.0
  %1180 = vmatprep.subr.mxu0 0.0
  %1181 = vmatpush1.msra.mxu0 0.0
  %1182 = vmatprep.subr.mxu0 0.0
  %1183 = vmatpush1.msra.mxu0 0.0
  %1184 = vmatprep.subr.mxu0 0.0
  %1185 = vmatpush1.msra.mxu0 0.0
  %1186 = vmatprep.subr.mxu0 0.0
  %1187 = vmatpush1.msra.mxu0 0.0
  %1188 = vmatprep.subr.mxu0 0.0
  %1189 = vmatpush1.msra.mxu0 0.0
  %1190 = vmatprep.subr.mxu0 0.0
  %1191 = vmatpush1.msra.mxu0 0.0
  %1192 = vmatprep.mubr.f32.mxu0 0.0
  %1193 = vmatmul.mubr.f32.gmra.mrb[0].mxu0 %v1126
  %v1194 = vpop.f32.mrb[0].mxu0
  %v1195 = vadd.f32 %v1121, %v1194
  %v1196 = vpop.f32.mrb[0].mxu0
  %1197 = vdwg.mxu0
  %v1198 = vxor.u32 %v1195, 2147483648
  %v1199 = vmul.f32 %v1198, 1.442695
  %v1200 = vpow.pop %v1199
  %v1201 = vadd.f32 %v1200, 1.0
  %v1202 = vrcp.pop %v1201
  %v1203 = vmul.f32 1.0, %v1202
  %v1204 = vtanh.pop %v1195
  %1206 = vrot.lane.b32.xlu0 %v1204, 64
  %v1207 = vpop.permute.xlu0 %1206
  %v1209 = vmul.f32 %v1203, %v1207
  %v1210 = vtanh.pop %v1209
  %1212 = vrot.lane.b32.xlu0 %v1210, 96
  %v1213 = vpop.permute.xlu0 %1212
  %v1215 = vmul.f32 %v1203, %v1213
  %v1216 = vld [vmem:[%s8] sm:$0xff]
  %v1217 = vld [vmem:[%s8 + $0x8] sm:$0xff]
  %v1218 = vld [vmem:[%s8 + $0x10] sm:$0xff]
  %v1219 = vld [vmem:[%s8 + $0x18] sm:$0xff]
  %v1220 = vld [vmem:[%s9] sm:$0x1]
  %v1222 = vlaneseq
  %v1223 = vshrl.u32 %v1222, 7
  %v1224 = vsub.s32 0, %v1223
  %v1225 = vrot.slane %v1220, %v1224
  %1228 = vrot.lane.b32.xlu0 %v1215, 32
  %v1229 = vpop.permute.xlu0 %1228
  %v1230 = vsel %vm209, %v1229, 0
  %1232 = vmatprep.subr.mxu0 0.0
  %1233 = vmatpush1.msra.mxu0 %v1216
  %1234 = vmatprep.subr.mxu0 0.0
  %1235 = vmatpush1.msra.mxu0 %v1217
  %1236 = vmatprep.subr.mxu0 0.0
  %1237 = vmatpush1.msra.mxu0 %v1218
  %1238 = vmatprep.subr.mxu0 0.0
  %1239 = vmatpush1.msra.mxu0 %v1219
  %1240 = vmatprep.subr.mxu0 0.0
  %1241 = vmatpush1.msra.mxu0 0.0
  %1242 = vmatprep.subr.mxu0 0.0
  %1243 = vmatpush1.msra.mxu0 0.0
  %1244 = vmatprep.subr.mxu0 0.0
  %1245 = vmatpush1.msra.mxu0 0.0
  %1246 = vmatprep.subr.mxu0 0.0
  %1247 = vmatpush1.msra.mxu0 0.0
  %1248 = vmatprep.subr.mxu0 0.0
  %1249 = vmatpush1.msra.mxu0 0.0
  %1250 = vmatprep.subr.mxu0 0.0
  %1251 = vmatpush1.msra.mxu0 0.0
  %1252 = vmatprep.subr.mxu0 0.0
  %1253 = vmatpush1.msra.mxu0 0.0
  %1254 = vmatprep.subr.mxu0 0.0
  %1255 = vmatpush1.msra.mxu0 0.0
  %1256 = vmatprep.subr.mxu0 0.0
  %1257 = vmatpush1.msra.mxu0 0.0
  %1258 = vmatprep.subr.mxu0 0.0
  %1259 = vmatpush1.msra.mxu0 0.0
  %1260 = vmatprep.subr.mxu0 0.0
  %1261 = vmatpush1.msra.mxu0 0.0
  %1262 = vmatprep.subr.mxu0 0.0
  %1263 = vmatpush1.msra.mxu0 0.0
  %1264 = vmatprep.subr.mxu0 0.0
  %1265 = vmatpush1.msra.mxu0 0.0
  %1266 = vmatprep.subr.mxu0 0.0
  %1267 = vmatpush1.msra.mxu0 0.0
  %1268 = vmatprep.subr.mxu0 0.0
  %1269 = vmatpush1.msra.mxu0 0.0
  %1270 = vmatprep.subr.mxu0 0.0
  %1271 = vmatpush1.msra.mxu0 0.0
  %1272 = vmatprep.subr.mxu0 0.0
  %1273 = vmatpush1.msra.mxu0 0.0
  %1274 = vmatprep.subr.mxu0 0.0
  %1275 = vmatpush1.msra.mxu0 0.0
  %1276 = vmatprep.subr.mxu0 0.0
  %1277 = vmatpush1.msra.mxu0 0.0
  %1278 = vmatprep.subr.mxu0 0.0
  %1279 = vmatpush1.msra.mxu0 0.0
  %1280 = vmatprep.subr.mxu0 0.0
  %1281 = vmatpush1.msra.mxu0 0.0
  %1282 = vmatprep.subr.mxu0 0.0
  %1283 = vmatpush1.msra.mxu0 0.0
  %1284 = vmatprep.subr.mxu0 0.0
  %1285 = vmatpush1.msra.mxu0 0.0
  %1286 = vmatprep.subr.mxu0 0.0
  %1287 = vmatpush1.msra.mxu0 0.0
  %1288 = vmatprep.subr.mxu0 0.0
  %1289 = vmatpush1.msra.mxu0 0.0
  %1290 = vmatprep.subr.mxu0 0.0
  %1291 = vmatpush1.msra.mxu0 0.0
  %1292 = vmatprep.subr.mxu0 0.0
  %1293 = vmatpush1.msra.mxu0 0.0
  %1294 = vmatprep.subr.mxu0 0.0
  %1295 = vmatpush1.msra.mxu0 0.0
  %1296 = vmatprep.mubr.f32.mxu0 0.0
  %1297 = vmatmul.mubr.f32.gmra.mrb[0].mxu0 %v1230
  %v1298 = vpop.f32.mrb[0].mxu0
  %v1299 = vadd.f32 %v1225, %v1298
  %v1300 = vpop.f32.mrb[0].mxu0
  %1301 = vdwg.mxu0
  %v1302 = vld [vmem:[%s10] sm:$0xff]
  %v1303 = vld [vmem:[%s10 + $0x8] sm:$0xff]
  %v1304 = vld [vmem:[%s11] sm:$0x1]
  %v1306 = vlaneseq
  %v1307 = vshrl.u32 %v1306, 7
  %v1308 = vsub.s32 0, %v1307
  %v1309 = vrot.slane %v1304, %v1308
  %vm1311 = vcmask 130048
  %v1313 = vsel %vm1311, %v1299, 0
  %1315 = vmatprep.subr.mxu0 0.0
  %1316 = vmatpush1.msra.mxu0 %v1302
  %1317 = vmatprep.subr.mxu0 0.0
  %1318 = vmatpush1.msra.mxu0 %v1303
  %1319 = vmatprep.subr.mxu0 0.0
  %1320 = vmatpush1.msra.mxu0 0.0
  %1321 = vmatprep.subr.mxu0 0.0
  %1322 = vmatpush1.msra.mxu0 0.0
  %1323 = vmatprep.subr.mxu0 0.0
  %1324 = vmatpush1.msra.mxu0 0.0
  %1325 = vmatprep.subr.mxu0 0.0
  %1326 = vmatpush1.msra.mxu0 0.0
  %1327 = vmatprep.subr.mxu0 0.0
  %1328 = vmatpush1.msra.mxu0 0.0
  %1329 = vmatprep.subr.mxu0 0.0
  %1330 = vmatpush1.msra.mxu0 0.0
  %1331 = vmatprep.subr.mxu0 0.0
  %1332 = vmatpush1.msra.mxu0 0.0
  %1333 = vmatprep.subr.mxu0 0.0
  %1334 = vmatpush1.msra.mxu0 0.0
  %1335 = vmatprep.subr.mxu0 0.0
  %1336 = vmatpush1.msra.mxu0 0.0
  %1337 = vmatprep.subr.mxu0 0.0
  %1338 = vmatpush1.msra.mxu0 0.0
  %1339 = vmatprep.subr.mxu0 0.0
  %1340 = vmatpush1.msra.mxu0 0.0
  %1341 = vmatprep.subr.mxu0 0.0
  %1342 = vmatpush1.msra.mxu0 0.0
  %1343 = vmatprep.subr.mxu0 0.0
  %1344 = vmatpush1.msra.mxu0 0.0
  %1345 = vmatprep.subr.mxu0 0.0
  %1346 = vmatpush1.msra.mxu0 0.0
  %1347 = vmatprep.subr.mxu0 0.0
  %1348 = vmatpush1.msra.mxu0 0.0
  %1349 = vmatprep.subr.mxu0 0.0
  %1350 = vmatpush1.msra.mxu0 0.0
  %1351 = vmatprep.subr.mxu0 0.0
  %1352 = vmatpush1.msra.mxu0 0.0
  %1353 = vmatprep.subr.mxu0 0.0
  %1354 = vmatpush1.msra.mxu0 0.0
  %1355 = vmatprep.subr.mxu0 0.0
  %1356 = vmatpush1.msra.mxu0 0.0
  %1357 = vmatprep.subr.mxu0 0.0
  %1358 = vmatpush1.msra.mxu0 0.0
  %1359 = vmatprep.subr.mxu0 0.0
  %1360 = vmatpush1.msra.mxu0 0.0
  %1361 = vmatprep.subr.mxu0 0.0
  %1362 = vmatpush1.msra.mxu0 0.0
  %1363 = vmatprep.subr.mxu0 0.0
  %1364 = vmatpush1.msra.mxu0 0.0
  %1365 = vmatprep.subr.mxu0 0.0
  %1366 = vmatpush1.msra.mxu0 0.0
  %1367 = vmatprep.subr.mxu0 0.0
  %1368 = vmatpush1.msra.mxu0 0.0
  %1369 = vmatprep.subr.mxu0 0.0
  %1370 = vmatpush1.msra.mxu0 0.0
  %1371 = vmatprep.subr.mxu0 0.0
  %1372 = vmatpush1.msra.mxu0 0.0
  %1373 = vmatprep.subr.mxu0 0.0
  %1374 = vmatpush1.msra.mxu0 0.0
  %1375 = vmatprep.subr.mxu0 0.0
  %1376 = vmatpush1.msra.mxu0 0.0
  %1377 = vmatprep.subr.mxu0 0.0
  %1378 = vmatpush1.msra.mxu0 0.0
  %1379 = vmatprep.mubr.f32.mxu0 0.0
  %1380 = vmatmul.mubr.f32.gmra.mrb[0].mxu0 %v1313
  %v1381 = vpop.f32.mrb[0].mxu0
  %v1382 = vadd.f32 %v1309, %v1381
  %v1383 = vpop.f32.mrb[0].mxu0
  %1384 = vdwg.mxu0
  %v1385 = vxor.u32 %v1382, 2147483648
  %v1386 = vmul.f32 %v1385, 1.442695
  %v1387 = vpow.pop %v1386
  %v1388 = vadd.f32 %v1387, 1.0
  %v1389 = vrcp.pop %v1388
  %v1390 = vmul.f32 1.0, %v1389
  %v1391 = vtanh.pop %v1382
  %1393 = vrot.lane.b32.xlu0 %v1391, 64
  %v1394 = vpop.permute.xlu0 %1393
  %v1396 = vmul.f32 %v1390, %v1394
  %v1397 = vtanh.pop %v1396
  %1399 = vrot.lane.b32.xlu0 %v1397, 96
  %v1400 = vpop.permute.xlu0 %1399
  %v1402 = vmul.f32 %v1390, %v1400
  %v1403 = vld [vmem:[%s12] sm:$0xff]
  %v1404 = vld [vmem:[%s12 + $0x8] sm:$0xff]
  %v1405 = vld [vmem:[%s12 + $0x10] sm:$0xff]
  %v1406 = vld [vmem:[%s12 + $0x18] sm:$0xff]
  %v1407 = vld [vmem:[%s13] sm:$0x1]
  %v1409 = vlaneseq
  %v1410 = vshrl.u32 %v1409, 7
  %v1411 = vsub.s32 0, %v1410
  %v1412 = vrot.slane %v1407, %v1411
  %1415 = vrot.lane.b32.xlu0 %v1402, 32
  %v1416 = vpop.permute.xlu0 %1415
  %v1417 = vsel %vm209, %v1416, 0
  %1419 = vmatprep.subr.mxu0 0.0
  %1420 = vmatpush1.msra.mxu0 %v1403
  %1421 = vmatprep.subr.mxu0 0.0
  %1422 = vmatpush1.msra.mxu0 %v1404
  %1423 = vmatprep.subr.mxu0 0.0
  %1424 = vmatpush1.msra.mxu0 %v1405
  %1425 = vmatprep.subr.mxu0 0.0
  %1426 = vmatpush1.msra.mxu0 %v1406
  %1427 = vmatprep.subr.mxu0 0.0
  %1428 = vmatpush1.msra.mxu0 0.0
  %1429 = vmatprep.subr.mxu0 0.0
  %1430 = vmatpush1.msra.mxu0 0.0
  %1431 = vmatprep.subr.mxu0 0.0
  %1432 = vmatpush1.msra.mxu0 0.0
  %1433 = vmatprep.subr.mxu0 0.0
  %1434 = vmatpush1.msra.mxu0 0.0
  %1435 = vmatprep.subr.mxu0 0.0
  %1436 = vmatpush1.msra.mxu0 0.0
  %1437 = vmatprep.subr.mxu0 0.0
  %1438 = vmatpush1.msra.mxu0 0.0
  %1439 = vmatprep.subr.mxu0 0.0
  %1440 = vmatpush1.msra.mxu0 0.0
  %1441 = vmatprep.subr.mxu0 0.0
  %1442 = vmatpush1.msra.mxu0 0.0
  %1443 = vmatprep.subr.mxu0 0.0
  %1444 = vmatpush1.msra.mxu0 0.0
  %1445 = vmatprep.subr.mxu0 0.0
  %1446 = vmatpush1.msra.mxu0 0.0
  %1447 = vmatprep.subr.mxu0 0.0
  %1448 = vmatpush1.msra.mxu0 0.0
  %1449 = vmatprep.subr.mxu0 0.0
  %1450 = vmatpush1.msra.mxu0 0.0
  %1451 = vmatprep.subr.mxu0 0.0
  %1452 = vmatpush1.msra.mxu0 0.0
  %1453 = vmatprep.subr.mxu0 0.0
  %1454 = vmatpush1.msra.mxu0 0.0
  %1455 = vmatprep.subr.mxu0 0.0
  %1456 = vmatpush1.msra.mxu0 0.0
  %1457 = vmatprep.subr.mxu0 0.0
  %1458 = vmatpush1.msra.mxu0 0.0
  %1459 = vmatprep.subr.mxu0 0.0
  %1460 = vmatpush1.msra.mxu0 0.0
  %1461 = vmatprep.subr.mxu0 0.0
  %1462 = vmatpush1.msra.mxu0 0.0
  %1463 = vmatprep.subr.mxu0 0.0
  %1464 = vmatpush1.msra.mxu0 0.0
  %1465 = vmatprep.subr.mxu0 0.0
  %1466 = vmatpush1.msra.mxu0 0.0
  %1467 = vmatprep.subr.mxu0 0.0
  %1468 = vmatpush1.msra.mxu0 0.0
  %1469 = vmatprep.subr.mxu0 0.0
  %1470 = vmatpush1.msra.mxu0 0.0
  %1471 = vmatprep.subr.mxu0 0.0
  %1472 = vmatpush1.msra.mxu0 0.0
  %1473 = vmatprep.subr.mxu0 0.0
  %1474 = vmatpush1.msra.mxu0 0.0
  %1475 = vmatprep.subr.mxu0 0.0
  %1476 = vmatpush1.msra.mxu0 0.0
  %1477 = vmatprep.subr.mxu0 0.0
  %1478 = vmatpush1.msra.mxu0 0.0
  %1479 = vmatprep.subr.mxu0 0.0
  %1480 = vmatpush1.msra.mxu0 0.0
  %1481 = vmatprep.subr.mxu0 0.0
  %1482 = vmatpush1.msra.mxu0 0.0
  %1483 = vmatprep.mubr.f32.mxu0 0.0
  %1484 = vmatmul.mubr.f32.gmra.mrb[0].mxu0 %v1417
  %v1485 = vpop.f32.mrb[0].mxu0
  %v1486 = vadd.f32 %v1412, %v1485
  %v1487 = vpop.f32.mrb[0].mxu0
  %1488 = vdwg.mxu0
  %v1489 = vld [vmem:[%s14] sm:$0xff]
  %v1490 = vld [vmem:[%s14 + $0x8] sm:$0xff]
  %v1491 = vld [vmem:[#allocation2] sm:$0x1]
  %v1493 = vlaneseq
  %v1494 = vshrl.u32 %v1493, 7
  %v1495 = vsub.s32 0, %v1494
  %v1496 = vrot.slane %v1491, %v1495
  %v1499 = vsel %vm1311, %v1486, 0
  %1501 = vmatprep.subr.mxu0 0.0
  %1502 = vmatpush1.msra.mxu0 %v1489
  %1503 = vmatprep.subr.mxu0 0.0
  %1504 = vmatpush1.msra.mxu0 %v1490
  %1505 = vmatprep.subr.mxu0 0.0
  %1506 = vmatpush1.msra.mxu0 0.0
  %1507 = vmatprep.subr.mxu0 0.0
  %1508 = vmatpush1.msra.mxu0 0.0
  %1509 = vmatprep.subr.mxu0 0.0
  %1510 = vmatpush1.msra.mxu0 0.0
  %1511 = vmatprep.subr.mxu0 0.0
  %1512 = vmatpush1.msra.mxu0 0.0
  %1513 = vmatprep.subr.mxu0 0.0
  %1514 = vmatpush1.msra.mxu0 0.0
  %1515 = vmatprep.subr.mxu0 0.0
  %1516 = vmatpush1.msra.mxu0 0.0
  %1517 = vmatprep.subr.mxu0 0.0
  %1518 = vmatpush1.msra.mxu0 0.0
  %1519 = vmatprep.subr.mxu0 0.0
  %1520 = vmatpush1.msra.mxu0 0.0
  %1521 = vmatprep.subr.mxu0 0.0
  %1522 = vmatpush1.msra.mxu0 0.0
  %1523 = vmatprep.subr.mxu0 0.0
  %1524 = vmatpush1.msra.mxu0 0.0
  %1525 = vmatprep.subr.mxu0 0.0
  %1526 = vmatpush1.msra.mxu0 0.0
  %1527 = vmatprep.subr.mxu0 0.0
  %1528 = vmatpush1.msra.mxu0 0.0
  %1529 = vmatprep.subr.mxu0 0.0
  %1530 = vmatpush1.msra.mxu0 0.0
  %1531 = vmatprep.subr.mxu0 0.0
  %1532 = vmatpush1.msra.mxu0 0.0
  %1533 = vmatprep.subr.mxu0 0.0
  %1534 = vmatpush1.msra.mxu0 0.0
  %1535 = vmatprep.subr.mxu0 0.0
  %1536 = vmatpush1.msra.mxu0 0.0
  %1537 = vmatprep.subr.mxu0 0.0
  %1538 = vmatpush1.msra.mxu0 0.0
  %1539 = vmatprep.subr.mxu0 0.0
  %1540 = vmatpush1.msra.mxu0 0.0
  %1541 = vmatprep.subr.mxu0 0.0
  %1542 = vmatpush1.msra.mxu0 0.0
  %1543 = vmatprep.subr.mxu0 0.0
  %1544 = vmatpush1.msra.mxu0 0.0
  %1545 = vmatprep.subr.mxu0 0.0
  %1546 = vmatpush1.msra.mxu0 0.0
  %1547 = vmatprep.subr.mxu0 0.0
  %1548 = vmatpush1.msra.mxu0 0.0
  %1549 = vmatprep.subr.mxu0 0.0
  %1550 = vmatpush1.msra.mxu0 0.0
  %1551 = vmatprep.subr.mxu0 0.0
  %1552 = vmatpush1.msra.mxu0 0.0
  %1553 = vmatprep.subr.mxu0 0.0
  %1554 = vmatpush1.msra.mxu0 0.0
  %1555 = vmatprep.subr.mxu0 0.0
  %1556 = vmatpush1.msra.mxu0 0.0
  %1557 = vmatprep.subr.mxu0 0.0
  %1558 = vmatpush1.msra.mxu0 0.0
  %1559 = vmatprep.subr.mxu0 0.0
  %1560 = vmatpush1.msra.mxu0 0.0
  %1561 = vmatprep.subr.mxu0 0.0
  %1562 = vmatpush1.msra.mxu0 0.0
  %1563 = vmatprep.subr.mxu0 0.0
  %1564 = vmatpush1.msra.mxu0 0.0
  %1565 = vmatprep.mubr.f32.mxu0 0.0
  %1566 = vmatmul.mubr.f32.gmra.mrb[0].mxu0 %v1499
  %v1567 = vpop.f32.mrb[0].mxu0
  %v1568 = vadd.f32 %v1496, %v1567
  %v1569 = vpop.f32.mrb[0].mxu0
  %1570 = vdwg.mxu0
  %v1571 = vmax.f32 %v1568, 0.0
  %vm1572 = vcmask 7168
  %1573 = vst.msk [vmem:[%s16] sm:$0xff] %vm1572, %v1571
  // Predicated region
  $region66: #{tpu_custom_call.1} parent=0 // pred_check
    _
  $region67: #{tpu_custom_call.1} parent=0 // pred_check_branch
    %1575 = sbr.rel (0) target = $region69
  $region68: #{tpu_custom_call.1} parent=0 // pred_region
    _
  $region69: #{tpu_custom_call.1} parent=0 // pred_fallthru
    _
  // Predicated region
  $region70: #{tpu_custom_call.1} parent=0 // pred_check
    _
  $region71: #{tpu_custom_call.1} parent=0 // pred_check_branch
    %1577 = sbr.rel (0) target = $region73
  $region72: #{tpu_custom_call.1} parent=0 // pred_region
    _
  $region73: #{tpu_custom_call.1} parent=0 // pred_fallthru
    _

</llo_original>
